<compile_context>
chip_gen: v7x
topology: tpu7x:2x2x1
jax: 0.10.0
libtpu: 0.0.40
codegen_flags: <defaults>
</compile_context>

<pallas_src>
import functools

import jax
import jax.numpy as jnp
from jax import lax
from jax.experimental import pallas as pl
from jax.experimental.pallas import tpu as pltpu


def _round_up(x, m):
    return (x + m - 1) // m * m


# --------------------------------------------------------------------------
# Pallas GRU recurrence kernel.
# grid = (batch_blocks, time_chunks); hidden state lives in VMEM scratch that
# persists across the (sequential, "arbitrary") time-chunk axis.
# --------------------------------------------------------------------------
def _gru_kernel(lens_ref,        # (B_BLK, 1)        int32  VMEM
                gi_ref,          # (Tc, B_BLK, 3Hp)  f32    VMEM (precomputed x@W_ih^T + b_ih)
                whh_ref,         # (Hp, 3Hp)         f32    VMEM (pre-transposed)
                bhh_ref,         # (1, 3Hp)          f32    VMEM
                out_ref,         # (Tc, B_BLK, Hp)   f32    VMEM
                hfin_ref,        # (1, B_BLK, Hp)    f32    VMEM (written at last chunk)
                h_scratch):      # (B_BLK, Hp)       f32    VMEM scratch (carry)
    tc = pl.program_id(1)
    t_chunk = gi_ref.shape[0]
    hdim = h_scratch.shape[-1]          # Hp (multiple of 128)

    @pl.when(tc == 0)
    def _():
        h_scratch[...] = jnp.zeros_like(h_scratch)

    # Hoist invariant loads out of the unrolled time loop.
    w_hh = whh_ref[...]                 # (Hp, 3Hp)
    b_hh = bhh_ref[...]                 # (1, 3Hp)
    lens = lens_ref[...]                # (B_BLK, 1) int32
    t_base = tc * t_chunk

    def step(i, h):
        gi = gi_ref[i]                  # (B_BLK, 3Hp)  -- input gates, precomputed
        gh = jnp.dot(h, w_hh, preferred_element_type=jnp.float32) + b_hh

        # Lane-aligned gate slices (Hp is a multiple of 128).
        r = jax.nn.sigmoid(gi[:, :hdim] + gh[:, :hdim])
        z = jax.nn.sigmoid(gi[:, hdim:2 * hdim] + gh[:, hdim:2 * hdim])
        n = jnp.tanh(gi[:, 2 * hdim:] + r * gh[:, 2 * hdim:])
        h_new = (1.0 - z) * n + z * h

        active = (t_base + i) < lens                    # (B_BLK, 1) bool
        h_next = jnp.where(active, h_new, h)            # freeze finished seqs
        out_ref[i] = jnp.where(active, h_new, 0.0)      # zero-pad finished seqs
        return h_next

    h = lax.fori_loop(0, t_chunk, step, h_scratch[...], unroll=True)
    h_scratch[...] = h

    @pl.when(tc == pl.num_programs(1) - 1)
    def _():
        hfin_ref[0] = h


@functools.partial(jax.jit, static_argnames=("t_chunk", "b_block"))
def _gru_pallas(gi_tbg, lens_b1, w_hh_t, b_hh_p, *, t_chunk, b_block):
    Tp, Bp, G = gi_tbg.shape
    Hp = w_hh_t.shape[0]
    assert G == 3 * Hp
    assert Tp % t_chunk == 0 and Bp % b_block == 0
    num_bb = Bp // b_block
    num_tc = Tp // t_chunk

    grid_spec = pltpu.PrefetchScalarGridSpec(
        num_scalar_prefetch=0,
        grid=(num_bb, num_tc),
        in_specs=[
            pl.BlockSpec((b_block, 1), lambda b, t: (b, 0)),              # lens
            pl.BlockSpec((t_chunk, b_block, 3 * Hp),
                         lambda b, t: (t, b, 0)),                         # gi chunk
            pl.BlockSpec((Hp, 3 * Hp), lambda b, t: (0, 0)),              # W_hh^T
            pl.BlockSpec((1, 3 * Hp), lambda b, t: (0, 0)),               # b_hh
        ],
        out_specs=[
            pl.BlockSpec((t_chunk, b_block, Hp), lambda b, t: (t, b, 0)),  # outputs
            pl.BlockSpec((1, b_block, Hp), lambda b, t: (0, b, 0)),        # final h
        ],
        scratch_shapes=[pltpu.VMEM((b_block, Hp), jnp.float32)],
    )

    outputs, hidden = pl.pallas_call(
        _gru_kernel,
        out_shape=(
            jax.ShapeDtypeStruct((Tp, Bp, Hp), jnp.float32),
            jax.ShapeDtypeStruct((1, Bp, Hp), jnp.float32),
        ),
        grid_spec=grid_spec,
        compiler_params=pltpu.CompilerParams(
            # batch blocks independent (v7x megacore), time chunks sequential.
            dimension_semantics=("parallel", "arbitrary")),
    )(lens_b1, gi_tbg, w_hh_t, b_hh_p)
    return outputs, hidden


# --------------------------------------------------------------------------
# Encoder wrapper: embedding lookup + hoisted input projection + padding glue.
# --------------------------------------------------------------------------
class Encoder:
    def __init__(self, input_dim, emb_dim, hidden_dim, num_layers=1,
                 cell_type="GRU", dropout=0.0, seed=0):
        assert cell_type == "GRU" and num_layers == 1
        # dropout is a no-op when num_layers == 1, exactly as in PyTorch.
        self.emb_dim, self.hidden_dim = emb_dim, hidden_dim
        H = hidden_dim
        key = jax.random.PRNGKey(seed)
        ks = jax.random.split(key, 5)
        k = 1.0 / jnp.sqrt(H)
        self.embedding = jax.random.normal(ks[0], (input_dim, emb_dim), jnp.float32)
        # PyTorch-layout parameters (used by the pure-JAX reference).
        self.w_ih = jax.random.uniform(ks[1], (3 * H, emb_dim), jnp.float32, -k, k)
        self.w_hh = jax.random.uniform(ks[2], (3 * H, H), jnp.float32, -k, k)
        self.b_ih = jax.random.uniform(ks[3], (1, 3 * H), jnp.float32, -k, k)
        self.b_hh = jax.random.uniform(ks[4], (1, 3 * H), jnp.float32, -k, k)

        # Kernel-ready copies: pre-transposed + zero-padded to Hp = round_up(H, 128).
        # Zero weights/biases on padded gate lanes keep padded hidden lanes at
        # exactly 0 given h0 = 0, so results are unchanged.
        Hp = _round_up(H, 128)
        self.hp = Hp
        w_ih_t = jnp.zeros((emb_dim, 3 * Hp), jnp.float32)
        w_hh_t = jnp.zeros((Hp, 3 * Hp), jnp.float32)
        b_ih_p = jnp.zeros((1, 3 * Hp), jnp.float32)
        b_hh_p = jnp.zeros((1, 3 * Hp), jnp.float32)
        for g in range(3):
            w_ih_t = w_ih_t.at[:, g * Hp:g * Hp + H].set(self.w_ih[g * H:(g + 1) * H].T)
            w_hh_t = w_hh_t.at[:H, g * Hp:g * Hp + H].set(self.w_hh[g * H:(g + 1) * H].T)
            b_ih_p = b_ih_p.at[:, g * Hp:g * Hp + H].set(self.b_ih[:, g * H:(g + 1) * H])
            b_hh_p = b_hh_p.at[:, g * Hp:g * Hp + H].set(self.b_hh[:, g * H:(g + 1) * H])
        self.w_ih_t, self.w_hh_t = w_ih_t, w_hh_t
        self.b_ih_p, self.b_hh_p = b_ih_p, b_hh_p

    def __call__(self, src, src_lens, *, t_chunk=8):
        # src: (B, S) int32 token ids;  src_lens: host-side python ints.
        B = src.shape[0]
        H, Hp = self.hidden_dim, self.hp
        max_len = int(max(src_lens))                      # pad_packed truncates
        Tp = _round_up(max_len, t_chunk)
        Bp = _round_up(B, 8)

        embedded = jnp.take(self.embedding, src[:, :max_len], axis=0)   # (B, T, E)
        # Hoisted input projection: one big matmul for all timesteps, emitted
        # time-major so the recurrent kernel needs no input transpose pass.
        gi = jnp.einsum("bte,eg->tbg", embedded, self.w_ih_t) + self.b_ih_p  # (T, B, 3Hp)
        gi = jnp.pad(gi, ((0, Tp - max_len), (0, Bp - B), (0, 0)))

        lens = jnp.zeros((Bp, 1), jnp.int32).at[:B, 0].set(
            jnp.asarray(src_lens, jnp.int32))             # pad rows: len 0 -> h stays 0

        out_tbh, hid = _gru_pallas(gi, lens, self.w_hh_t, self.b_hh_p,
                                   t_chunk=t_chunk, b_block=Bp)

        outputs = jnp.transpose(out_tbh[:max_len, :B, :H], (1, 0, 2))   # (B, T, H)
        hidden = hid[:, :B, :H]                                          # (1, B, H)
        return outputs, hidden


# --------------------------------------------------------------------------
# Pure-JAX reference (lax.scan GRU with packed-sequence masking).
# --------------------------------------------------------------------------
def _reference(enc, src, src_lens):
    max_len = int(max(src_lens))
    emb = jnp.take(enc.embedding, src, axis=0)[:, :max_len, :]   # (B, T, E)
    x = jnp.transpose(emb, (1, 0, 2))                            # (T, B, E)
    lens = jnp.asarray(src_lens, jnp.int32).reshape(-1, 1)
    H = enc.hidden_dim
    h0 = jnp.zeros((src.shape[0], H), jnp.float32)

    def step(h, inp):
        x_t, t = inp
        gi = x_t @ enc.w_ih.T + enc.b_ih
        gh = h @ enc.w_hh.T + enc.b_hh
        r = jax.nn.sigmoid(gi[:, :H] + gh[:, :H])
        z = jax.nn.sigmoid(gi[:, H:2 * H] + gh[:, H:2 * H])
        n = jnp.tanh(gi[:, 2 * H:] + r * gh[:, 2 * H:])
        h_new = (1.0 - z) * n + z * h
        m = (t < lens).astype(jnp.float32)
        return m * h_new + (1.0 - m) * h, m * h_new

    hT, outs = lax.scan(step, h0, (x, jnp.arange(max_len)))
    return jnp.transpose(outs, (1, 0, 2)), hT[None]


if __name__ == "__main__":
    B, S = 2, 8
    input_dim, emb_dim, hidden_dim = 20, 16, 32

    enc = Encoder(input_dim, emb_dim, hidden_dim, num_layers=1,
                  cell_type="GRU", dropout=0.0, seed=0)

    key = jax.random.PRNGKey(0)
    src = jax.random.randint(key, (B, S), 0, input_dim, dtype=jnp.int32)
    src_lens = [8, 5]   # host-side lengths, as pack_padded_sequence expects

    # t_chunk=4 -> two time chunks, exercising the carried hidden state.
    outputs, hidden = enc(src, src_lens, t_chunk=4)
    outputs, hidden = jax.block_until_ready((outputs, hidden))

    ref_out, ref_hid = _reference(enc, src, src_lens)
    assert outputs.shape == (B, max(src_lens), hidden_dim)
    assert hidden.shape == (1, B, hidden_dim)
    assert jnp.allclose(outputs, ref_out, atol=1e-4, rtol=1e-4)
    assert jnp.allclose(hidden, ref_hid, atol=1e-4, rtol=1e-4)

    print("KERNEL_OK")
</pallas_src>

<mosaic_0001>
module attributes {stable_mosaic.version = 11 : i64} {
  func.func @_gru_kernel(%arg0: i32, %arg1: i32, %arg2: memref<8x1xi32, #tpu.memory_space<vmem>>, %arg3: memref<4x8x384xf32, #tpu.memory_space<vmem>>, %arg4: memref<128x384xf32, #tpu.memory_space<vmem>>, %arg5: memref<1x384xf32, #tpu.memory_space<vmem>>, %arg6: memref<4x8x128xf32, #tpu.memory_space<vmem>>, %arg7: memref<1x8x128xf32, #tpu.memory_space<vmem>>, %arg8: memref<8x128xf32, #tpu.memory_space<vmem>>) attributes {dimension_semantics = [#tpu.dimension_semantics<parallel>, #tpu.dimension_semantics<arbitrary>], iteration_bounds = array<i64: 1, 2>, scalar_prefetch = 0 : i64, scratch_operands = 1 : i64, tpu.core_type = #tpu.core_type<tc>, window_params = [{transform_indices = @transform_0, window_bounds = array<i64: 8, 1>}, {transform_indices = @transform_1, window_bounds = array<i64: 4, 8, 384>}, {pipeline_mode = #tpu.pipeline_mode<synchronous>, transform_indices = @transform_2, window_bounds = array<i64: 128, 384>}, {pipeline_mode = #tpu.pipeline_mode<synchronous>, transform_indices = @transform_3, window_bounds = array<i64: 1, 384>}, {transform_indices = @transform_4, window_bounds = array<i64: 4, 8, 128>}, {transform_indices = @transform_5, window_bounds = array<i64: 1, 8, 128>}]} {
    %c0_i32 = arith.constant 0 : i32
    %0 = arith.cmpi eq, %arg1, %c0_i32 : i32
    %1 = arith.extui %0 : i1 to i32
    %c0_i32_0 = arith.constant 0 : i32
    %2 = arith.cmpi ne, %1, %c0_i32_0 : i32
    scf.if %2 {
      %cst_49 = arith.constant 0.000000e+00 : f32
      %196 = vector.broadcast %cst_49 : f32 to vector<8x128xf32>
      %c0_50 = arith.constant 0 : index
      %c0_51 = arith.constant 0 : index
      %197 = vector.load %arg8[%c0_50, %c0_51] : memref<8x128xf32, #tpu.memory_space<vmem>>, vector<8x128xf32>
      tpu.vector_store %arg8[%c0_50, %c0_51], %196 {strides = array<i32>} : memref<8x128xf32, #tpu.memory_space<vmem>>, vector<8x128xf32>,
    } else {
    }
    %c0 = arith.constant 0 : index
    %c0_1 = arith.constant 0 : index
    %3 = vector.load %arg4[%c0, %c0_1] : memref<128x384xf32, #tpu.memory_space<vmem>>, vector<128x384xf32>
    %c0_2 = arith.constant 0 : index
    %c0_3 = arith.constant 0 : index
    %4 = vector.load %arg5[%c0_2, %c0_3] : memref<1x384xf32, #tpu.memory_space<vmem>>, vector<1x384xf32>
    %c0_4 = arith.constant 0 : index
    %c0_5 = arith.constant 0 : index
    %5 = vector.load %arg2[%c0_4, %c0_5] : memref<8x1xi32, #tpu.memory_space<vmem>>, vector<8x1xi32>
    %c4_i32 = arith.constant 4 : i32
    %6 = arith.muli %arg1, %c4_i32 : i32
    %c0_6 = arith.constant 0 : index
    %c0_7 = arith.constant 0 : index
    %7 = vector.load %arg8[%c0_6, %c0_7] : memref<8x128xf32, #tpu.memory_space<vmem>>, vector<8x128xf32>
    %c0_i32_8 = arith.constant 0 : i32
    %8 = arith.index_cast %c0_i32_8 : i32 to index
    %c0_9 = arith.constant 0 : index
    %c0_10 = arith.constant 0 : index
    %9 = vector.load %arg3[%8, %c0_9, %c0_10] : memref<4x8x384xf32, #tpu.memory_space<vmem>>, vector<1x8x384xf32>
    %10 = vector.shape_cast %9 : vector<1x8x384xf32> to vector<8x384xf32>
    %cst = arith.constant dense<0.000000e+00> : vector<8x384xf32>
    %11 = tpu.matmul %7, %3, %cst {dimension_numbers = #tpu.dot_dimension_numbers<[1], [0], [0], [1], [0, 0, 1, 1], [], []>} : vector<8x128xf32>, vector<128x384xf32>, vector<8x384xf32> -> vector<8x384xf32>
    %12 = vector.broadcast %4 : vector<1x384xf32> to vector<8x384xf32>
    %13 = arith.addf %11, %12 : vector<8x384xf32>
    %14 = vector.extract_strided_slice %10 {offsets = [0, 0], sizes = [8, 128], strides = [1, 1]} : vector<8x384xf32> to vector<8x128xf32>
    %15 = vector.extract_strided_slice %13 {offsets = [0, 0], sizes = [8, 128], strides = [1, 1]} : vector<8x384xf32> to vector<8x128xf32>
    %16 = arith.addf %14, %15 : vector<8x128xf32>
    %17 = arith.negf %16 : vector<8x128xf32>
    %18 = math.exp %17 : vector<8x128xf32>
    %cst_11 = arith.constant 1.000000e+00 : f32
    %19 = vector.broadcast %cst_11 : f32 to vector<8x128xf32>
    %20 = arith.addf %19, %18 : vector<8x128xf32>
    %21 = arith.divf %19, %20 : vector<8x128xf32>
    %22 = vector.extract_strided_slice %10 {offsets = [0, 128], sizes = [8, 128], strides = [1, 1]} : vector<8x384xf32> to vector<8x128xf32>
    %23 = vector.extract_strided_slice %13 {offsets = [0, 128], sizes = [8, 128], strides = [1, 1]} : vector<8x384xf32> to vector<8x128xf32>
    %24 = arith.addf %22, %23 : vector<8x128xf32>
    %25 = arith.negf %24 : vector<8x128xf32>
    %26 = math.exp %25 : vector<8x128xf32>
    %cst_12 = arith.constant 1.000000e+00 : f32
    %27 = vector.broadcast %cst_12 : f32 to vector<8x128xf32>
    %28 = arith.addf %27, %26 : vector<8x128xf32>
    %29 = arith.divf %27, %28 : vector<8x128xf32>
    %30 = vector.extract_strided_slice %10 {offsets = [0, 256], sizes = [8, 128], strides = [1, 1]} : vector<8x384xf32> to vector<8x128xf32>
    %31 = vector.extract_strided_slice %13 {offsets = [0, 256], sizes = [8, 128], strides = [1, 1]} : vector<8x384xf32> to vector<8x128xf32>
    %32 = arith.mulf %21, %31 : vector<8x128xf32>
    %33 = arith.addf %30, %32 : vector<8x128xf32>
    %34 = math.tanh %33 : vector<8x128xf32>
    %cst_13 = arith.constant 1.000000e+00 : f32
    %35 = vector.broadcast %cst_13 : f32 to vector<8x128xf32>
    %36 = arith.subf %35, %29 : vector<8x128xf32>
    %37 = arith.mulf %36, %34 : vector<8x128xf32>
    %38 = arith.mulf %29, %7 : vector<8x128xf32>
    %39 = arith.addf %37, %38 : vector<8x128xf32>
    %40 = arith.addi %6, %c0_i32_8 : i32
    %41 = vector.broadcast %40 : i32 to vector<8x1xi32>
    %42 = arith.cmpi slt, %41, %5 : vector<8x1xi32>
    %43 = vector.shape_cast %42 : vector<8x1xi1> to vector<8x1xi1>
    %44 = vector.broadcast %43 : vector<8x1xi1> to vector<8x128xi1>
    %45 = arith.select %44, %39, %7 : vector<8x128xi1>, vector<8x128xf32>
    %cst_14 = arith.constant 0.000000e+00 : f32
    %46 = vector.shape_cast %42 : vector<8x1xi1> to vector<8x1xi1>
    %47 = vector.broadcast %46 : vector<8x1xi1> to vector<8x128xi1>
    %48 = vector.broadcast %cst_14 : f32 to vector<8x128xf32>
    %49 = arith.select %47, %39, %48 : vector<8x128xi1>, vector<8x128xf32>
    %50 = arith.index_cast %c0_i32_8 : i32 to index
    %c0_15 = arith.constant 0 : index
    %c0_16 = arith.constant 0 : index
    %51 = vector.load %arg6[%50, %c0_15, %c0_16] : memref<4x8x128xf32, #tpu.memory_space<vmem>>, vector<1x8x128xf32>
    %52 = vector.shape_cast %51 : vector<1x8x128xf32> to vector<8x128xf32>
    %53 = vector.shape_cast %49 : vector<8x128xf32> to vector<1x8x128xf32>
    tpu.vector_store %arg6[%50, %c0_15, %c0_16], %53 {strides = array<i32>} : memref<4x8x128xf32, #tpu.memory_space<vmem>>, vector<1x8x128xf32>,
    %c1_i32 = arith.constant 1 : i32
    %54 = arith.index_cast %c1_i32 : i32 to index
    %c0_17 = arith.constant 0 : index
    %c0_18 = arith.constant 0 : index
    %55 = vector.load %arg3[%54, %c0_17, %c0_18] : memref<4x8x384xf32, #tpu.memory_space<vmem>>, vector<1x8x384xf32>
    %56 = vector.shape_cast %55 : vector<1x8x384xf32> to vector<8x384xf32>
    %cst_19 = arith.constant dense<0.000000e+00> : vector<8x384xf32>
    %57 = tpu.matmul %45, %3, %cst_19 {dimension_numbers = #tpu.dot_dimension_numbers<[1], [0], [0], [1], [0, 0, 1, 1], [], []>} : vector<8x128xf32>, vector<128x384xf32>, vector<8x384xf32> -> vector<8x384xf32>
    %58 = vector.broadcast %4 : vector<1x384xf32> to vector<8x384xf32>
    %59 = arith.addf %57, %58 : vector<8x384xf32>
    %60 = vector.extract_strided_slice %56 {offsets = [0, 0], sizes = [8, 128], strides = [1, 1]} : vector<8x384xf32> to vector<8x128xf32>
    %61 = vector.extract_strided_slice %59 {offsets = [0, 0], sizes = [8, 128], strides = [1, 1]} : vector<8x384xf32> to vector<8x128xf32>
    %62 = arith.addf %60, %61 : vector<8x128xf32>
    %63 = arith.negf %62 : vector<8x128xf32>
    %64 = math.exp %63 : vector<8x128xf32>
    %cst_20 = arith.constant 1.000000e+00 : f32
    %65 = vector.broadcast %cst_20 : f32 to vector<8x128xf32>
    %66 = arith.addf %65, %64 : vector<8x128xf32>
    %67 = arith.divf %65, %66 : vector<8x128xf32>
    %68 = vector.extract_strided_slice %56 {offsets = [0, 128], sizes = [8, 128], strides = [1, 1]} : vector<8x384xf32> to vector<8x128xf32>
    %69 = vector.extract_strided_slice %59 {offsets = [0, 128], sizes = [8, 128], strides = [1, 1]} : vector<8x384xf32> to vector<8x128xf32>
    %70 = arith.addf %68, %69 : vector<8x128xf32>
    %71 = arith.negf %70 : vector<8x128xf32>
    %72 = math.exp %71 : vector<8x128xf32>
    %cst_21 = arith.constant 1.000000e+00 : f32
    %73 = vector.broadcast %cst_21 : f32 to vector<8x128xf32>
    %74 = arith.addf %73, %72 : vector<8x128xf32>
    %75 = arith.divf %73, %74 : vector<8x128xf32>
    %76 = vector.extract_strided_slice %56 {offsets = [0, 256], sizes = [8, 128], strides = [1, 1]} : vector<8x384xf32> to vector<8x128xf32>
    %77 = vector.extract_strided_slice %59 {offsets = [0, 256], sizes = [8, 128], strides = [1, 1]} : vector<8x384xf32> to vector<8x128xf32>
    %78 = arith.mulf %67, %77 : vector<8x128xf32>
    %79 = arith.addf %76, %78 : vector<8x128xf32>
    %80 = math.tanh %79 : vector<8x128xf32>
    %cst_22 = arith.constant 1.000000e+00 : f32
    %81 = vector.broadcast %cst_22 : f32 to vector<8x128xf32>
    %82 = arith.subf %81, %75 : vector<8x128xf32>
    %83 = arith.mulf %82, %80 : vector<8x128xf32>
    %84 = arith.mulf %75, %45 : vector<8x128xf32>
    %85 = arith.addf %83, %84 : vector<8x128xf32>
    %86 = arith.addi %6, %c1_i32 : i32
    %87 = vector.broadcast %86 : i32 to vector<8x1xi32>
    %88 = arith.cmpi slt, %87, %5 : vector<8x1xi32>
    %89 = vector.shape_cast %88 : vector<8x1xi1> to vector<8x1xi1>
    %90 = vector.broadcast %89 : vector<8x1xi1> to vector<8x128xi1>
    %91 = arith.select %90, %85, %45 : vector<8x128xi1>, vector<8x128xf32>
    %cst_23 = arith.constant 0.000000e+00 : f32
    %92 = vector.shape_cast %88 : vector<8x1xi1> to vector<8x1xi1>
    %93 = vector.broadcast %92 : vector<8x1xi1> to vector<8x128xi1>
    %94 = vector.broadcast %cst_23 : f32 to vector<8x128xf32>
    %95 = arith.select %93, %85, %94 : vector<8x128xi1>, vector<8x128xf32>
    %96 = arith.index_cast %c1_i32 : i32 to index
    %c0_24 = arith.constant 0 : index
    %c0_25 = arith.constant 0 : index
    %97 = vector.load %arg6[%96, %c0_24, %c0_25] : memref<4x8x128xf32, #tpu.memory_space<vmem>>, vector<1x8x128xf32>
    %98 = vector.shape_cast %97 : vector<1x8x128xf32> to vector<8x128xf32>
    %99 = vector.shape_cast %95 : vector<8x128xf32> to vector<1x8x128xf32>
    tpu.vector_store %arg6[%96, %c0_24, %c0_25], %99 {strides = array<i32>} : memref<4x8x128xf32, #tpu.memory_space<vmem>>, vector<1x8x128xf32>,
    %c2_i32 = arith.constant 2 : i32
    %100 = arith.index_cast %c2_i32 : i32 to index
    %c0_26 = arith.constant 0 : index
    %c0_27 = arith.constant 0 : index
    %101 = vector.load %arg3[%100, %c0_26, %c0_27] : memref<4x8x384xf32, #tpu.memory_space<vmem>>, vector<1x8x384xf32>
    %102 = vector.shape_cast %101 : vector<1x8x384xf32> to vector<8x384xf32>
    %cst_28 = arith.constant dense<0.000000e+00> : vector<8x384xf32>
    %103 = tpu.matmul %91, %3, %cst_28 {dimension_numbers = #tpu.dot_dimension_numbers<[1], [0], [0], [1], [0, 0, 1, 1], [], []>} : vector<8x128xf32>, vector<128x384xf32>, vector<8x384xf32> -> vector<8x384xf32>
    %104 = vector.broadcast %4 : vector<1x384xf32> to vector<8x384xf32>
    %105 = arith.addf %103, %104 : vector<8x384xf32>
    %106 = vector.extract_strided_slice %102 {offsets = [0, 0], sizes = [8, 128], strides = [1, 1]} : vector<8x384xf32> to vector<8x128xf32>
    %107 = vector.extract_strided_slice %105 {offsets = [0, 0], sizes = [8, 128], strides = [1, 1]} : vector<8x384xf32> to vector<8x128xf32>
    %108 = arith.addf %106, %107 : vector<8x128xf32>
    %109 = arith.negf %108 : vector<8x128xf32>
    %110 = math.exp %109 : vector<8x128xf32>
    %cst_29 = arith.constant 1.000000e+00 : f32
    %111 = vector.broadcast %cst_29 : f32 to vector<8x128xf32>
    %112 = arith.addf %111, %110 : vector<8x128xf32>
    %113 = arith.divf %111, %112 : vector<8x128xf32>
    %114 = vector.extract_strided_slice %102 {offsets = [0, 128], sizes = [8, 128], strides = [1, 1]} : vector<8x384xf32> to vector<8x128xf32>
    %115 = vector.extract_strided_slice %105 {offsets = [0, 128], sizes = [8, 128], strides = [1, 1]} : vector<8x384xf32> to vector<8x128xf32>
    %116 = arith.addf %114, %115 : vector<8x128xf32>
    %117 = arith.negf %116 : vector<8x128xf32>
    %118 = math.exp %117 : vector<8x128xf32>
    %cst_30 = arith.constant 1.000000e+00 : f32
    %119 = vector.broadcast %cst_30 : f32 to vector<8x128xf32>
    %120 = arith.addf %119, %118 : vector<8x128xf32>
    %121 = arith.divf %119, %120 : vector<8x128xf32>
    %122 = vector.extract_strided_slice %102 {offsets = [0, 256], sizes = [8, 128], strides = [1, 1]} : vector<8x384xf32> to vector<8x128xf32>
    %123 = vector.extract_strided_slice %105 {offsets = [0, 256], sizes = [8, 128], strides = [1, 1]} : vector<8x384xf32> to vector<8x128xf32>
    %124 = arith.mulf %113, %123 : vector<8x128xf32>
    %125 = arith.addf %122, %124 : vector<8x128xf32>
    %126 = math.tanh %125 : vector<8x128xf32>
    %cst_31 = arith.constant 1.000000e+00 : f32
    %127 = vector.broadcast %cst_31 : f32 to vector<8x128xf32>
    %128 = arith.subf %127, %121 : vector<8x128xf32>
    %129 = arith.mulf %128, %126 : vector<8x128xf32>
    %130 = arith.mulf %121, %91 : vector<8x128xf32>
    %131 = arith.addf %129, %130 : vector<8x128xf32>
    %132 = arith.addi %6, %c2_i32 : i32
    %133 = vector.broadcast %132 : i32 to vector<8x1xi32>
    %134 = arith.cmpi slt, %133, %5 : vector<8x1xi32>
    %135 = vector.shape_cast %134 : vector<8x1xi1> to vector<8x1xi1>
    %136 = vector.broadcast %135 : vector<8x1xi1> to vector<8x128xi1>
    %137 = arith.select %136, %131, %91 : vector<8x128xi1>, vector<8x128xf32>
    %cst_32 = arith.constant 0.000000e+00 : f32
    %138 = vector.shape_cast %134 : vector<8x1xi1> to vector<8x1xi1>
    %139 = vector.broadcast %138 : vector<8x1xi1> to vector<8x128xi1>
    %140 = vector.broadcast %cst_32 : f32 to vector<8x128xf32>
    %141 = arith.select %139, %131, %140 : vector<8x128xi1>, vector<8x128xf32>
    %142 = arith.index_cast %c2_i32 : i32 to index
    %c0_33 = arith.constant 0 : index
    %c0_34 = arith.constant 0 : index
    %143 = vector.load %arg6[%142, %c0_33, %c0_34] : memref<4x8x128xf32, #tpu.memory_space<vmem>>, vector<1x8x128xf32>
    %144 = vector.shape_cast %143 : vector<1x8x128xf32> to vector<8x128xf32>
    %145 = vector.shape_cast %141 : vector<8x128xf32> to vector<1x8x128xf32>
    tpu.vector_store %arg6[%142, %c0_33, %c0_34], %145 {strides = array<i32>} : memref<4x8x128xf32, #tpu.memory_space<vmem>>, vector<1x8x128xf32>,
    %c3_i32 = arith.constant 3 : i32
    %146 = arith.index_cast %c3_i32 : i32 to index
    %c0_35 = arith.constant 0 : index
    %c0_36 = arith.constant 0 : index
    %147 = vector.load %arg3[%146, %c0_35, %c0_36] : memref<4x8x384xf32, #tpu.memory_space<vmem>>, vector<1x8x384xf32>
    %148 = vector.shape_cast %147 : vector<1x8x384xf32> to vector<8x384xf32>
    %cst_37 = arith.constant dense<0.000000e+00> : vector<8x384xf32>
    %149 = tpu.matmul %137, %3, %cst_37 {dimension_numbers = #tpu.dot_dimension_numbers<[1], [0], [0], [1], [0, 0, 1, 1], [], []>} : vector<8x128xf32>, vector<128x384xf32>, vector<8x384xf32> -> vector<8x384xf32>
    %150 = vector.broadcast %4 : vector<1x384xf32> to vector<8x384xf32>
    %151 = arith.addf %149, %150 : vector<8x384xf32>
    %152 = vector.extract_strided_slice %148 {offsets = [0, 0], sizes = [8, 128], strides = [1, 1]} : vector<8x384xf32> to vector<8x128xf32>
    %153 = vector.extract_strided_slice %151 {offsets = [0, 0], sizes = [8, 128], strides = [1, 1]} : vector<8x384xf32> to vector<8x128xf32>
    %154 = arith.addf %152, %153 : vector<8x128xf32>
    %155 = arith.negf %154 : vector<8x128xf32>
    %156 = math.exp %155 : vector<8x128xf32>
    %cst_38 = arith.constant 1.000000e+00 : f32
    %157 = vector.broadcast %cst_38 : f32 to vector<8x128xf32>
    %158 = arith.addf %157, %156 : vector<8x128xf32>
    %159 = arith.divf %157, %158 : vector<8x128xf32>
    %160 = vector.extract_strided_slice %148 {offsets = [0, 128], sizes = [8, 128], strides = [1, 1]} : vector<8x384xf32> to vector<8x128xf32>
    %161 = vector.extract_strided_slice %151 {offsets = [0, 128], sizes = [8, 128], strides = [1, 1]} : vector<8x384xf32> to vector<8x128xf32>
    %162 = arith.addf %160, %161 : vector<8x128xf32>
    %163 = arith.negf %162 : vector<8x128xf32>
    %164 = math.exp %163 : vector<8x128xf32>
    %cst_39 = arith.constant 1.000000e+00 : f32
    %165 = vector.broadcast %cst_39 : f32 to vector<8x128xf32>
    %166 = arith.addf %165, %164 : vector<8x128xf32>
    %167 = arith.divf %165, %166 : vector<8x128xf32>
    %168 = vector.extract_strided_slice %148 {offsets = [0, 256], sizes = [8, 128], strides = [1, 1]} : vector<8x384xf32> to vector<8x128xf32>
    %169 = vector.extract_strided_slice %151 {offsets = [0, 256], sizes = [8, 128], strides = [1, 1]} : vector<8x384xf32> to vector<8x128xf32>
    %170 = arith.mulf %159, %169 : vector<8x128xf32>
    %171 = arith.addf %168, %170 : vector<8x128xf32>
    %172 = math.tanh %171 : vector<8x128xf32>
    %cst_40 = arith.constant 1.000000e+00 : f32
    %173 = vector.broadcast %cst_40 : f32 to vector<8x128xf32>
    %174 = arith.subf %173, %167 : vector<8x128xf32>
    %175 = arith.mulf %174, %172 : vector<8x128xf32>
    %176 = arith.mulf %167, %137 : vector<8x128xf32>
    %177 = arith.addf %175, %176 : vector<8x128xf32>
    %178 = arith.addi %6, %c3_i32 : i32
    %179 = vector.broadcast %178 : i32 to vector<8x1xi32>
    %180 = arith.cmpi slt, %179, %5 : vector<8x1xi32>
    %181 = vector.shape_cast %180 : vector<8x1xi1> to vector<8x1xi1>
    %182 = vector.broadcast %181 : vector<8x1xi1> to vector<8x128xi1>
    %183 = arith.select %182, %177, %137 : vector<8x128xi1>, vector<8x128xf32>
    %cst_41 = arith.constant 0.000000e+00 : f32
    %184 = vector.shape_cast %180 : vector<8x1xi1> to vector<8x1xi1>
    %185 = vector.broadcast %184 : vector<8x1xi1> to vector<8x128xi1>
    %186 = vector.broadcast %cst_41 : f32 to vector<8x128xf32>
    %187 = arith.select %185, %177, %186 : vector<8x128xi1>, vector<8x128xf32>
    %188 = arith.index_cast %c3_i32 : i32 to index
    %c0_42 = arith.constant 0 : index
    %c0_43 = arith.constant 0 : index
    %189 = vector.load %arg6[%188, %c0_42, %c0_43] : memref<4x8x128xf32, #tpu.memory_space<vmem>>, vector<1x8x128xf32>
    %190 = vector.shape_cast %189 : vector<1x8x128xf32> to vector<8x128xf32>
    %191 = vector.shape_cast %187 : vector<8x128xf32> to vector<1x8x128xf32>
    tpu.vector_store %arg6[%188, %c0_42, %c0_43], %191 {strides = array<i32>} : memref<4x8x128xf32, #tpu.memory_space<vmem>>, vector<1x8x128xf32>,
    %c4_i32_44 = arith.constant 4 : i32
    %c0_45 = arith.constant 0 : index
    %c0_46 = arith.constant 0 : index
    %192 = vector.load %arg8[%c0_45, %c0_46] : memref<8x128xf32, #tpu.memory_space<vmem>>, vector<8x128xf32>
    tpu.vector_store %arg8[%c0_45, %c0_46], %183 {strides = array<i32>} : memref<8x128xf32, #tpu.memory_space<vmem>>, vector<8x128xf32>,
    %c1_i32_47 = arith.constant 1 : i32
    %193 = arith.cmpi eq, %arg1, %c1_i32_47 : i32
    %194 = arith.extui %193 : i1 to i32
    %c0_i32_48 = arith.constant 0 : i32
    %195 = arith.cmpi ne, %194, %c0_i32_48 : i32
    scf.if %195 {
      %c0_49 = arith.constant 0 : index
      %c0_50 = arith.constant 0 : index
      %c0_51 = arith.constant 0 : index
      %196 = vector.load %arg7[%c0_49, %c0_50, %c0_51] : memref<1x8x128xf32, #tpu.memory_space<vmem>>, vector<1x8x128xf32>
      %197 = vector.shape_cast %196 : vector<1x8x128xf32> to vector<8x128xf32>
      %198 = vector.shape_cast %183 : vector<8x128xf32> to vector<1x8x128xf32>
      tpu.vector_store %arg7[%c0_49, %c0_50, %c0_51], %198 {strides = array<i32>} : memref<1x8x128xf32, #tpu.memory_space<vmem>>, vector<1x8x128xf32>,
    } else {
    }
    return
  }
  func.func @transform_0(%arg0: i32, %arg1: i32) -> (i32, i32) {
    %c0_i32 = arith.constant 0 : i32
    %c0_i32_0 = arith.constant 0 : i32
    return %arg0, %c0_i32 : i32, i32
  }
  func.func @transform_1(%arg0: i32, %arg1: i32) -> (i32, i32, i32) {
    %c0_i32 = arith.constant 0 : i32
    %c0_i32_0 = arith.constant 0 : i32
    return %arg1, %arg0, %c0_i32 : i32, i32, i32
  }
  func.func @transform_2(%arg0: i32, %arg1: i32) -> (i32, i32) {
    %c0_i32 = arith.constant 0 : i32
    %c0_i32_0 = arith.constant 0 : i32
    %c0_i32_1 = arith.constant 0 : i32
    return %c0_i32, %c0_i32_0 : i32, i32
  }
  func.func @transform_3(%arg0: i32, %arg1: i32) -> (i32, i32) {
    %c0_i32 = arith.constant 0 : i32
    %c0_i32_0 = arith.constant 0 : i32
    %c0_i32_1 = arith.constant 0 : i32
    return %c0_i32, %c0_i32_0 : i32, i32
  }
  func.func @transform_4(%arg0: i32, %arg1: i32) -> (i32, i32, i32) {
    %c0_i32 = arith.constant 0 : i32
    %c0_i32_0 = arith.constant 0 : i32
    return %arg1, %arg0, %c0_i32 : i32, i32, i32
  }
  func.func @transform_5(%arg0: i32, %arg1: i32) -> (i32, i32, i32) {
    %c0_i32 = arith.constant 0 : i32
    %c0_i32_0 = arith.constant 0 : i32
    %c0_i32_1 = arith.constant 0 : i32
    return %c0_i32, %arg0, %c0_i32_0 : i32, i32, i32
  }
}

</mosaic_0001>

<llo_original>
// kernel: _gru_pallas.1
$region0: #{_gru_pallas.1}
  #allocation0 [shape = 'u32[]', space=smem, size = 0x4, offset = 0x4, fixed_abs, tag = 'smem constant byte address 0x4 - core index']
  #allocation1 [shape = 'u32[144,128]{1,0:T(1,128)}', space=vmem, size = 0x12000, scoped, tag = 'internal scratch']
  #allocation2 [shape = 'f32[8,128]{1,0:T(8,128)}', space=vmem, size = 0x1000, scoped, tag = 'scratch operand']
  %s0 = inlined_call_operand.vmem [shape: s32[8,1], index: 0, kind: input, shape index: {}]
  %s1 = inlined_call_operand.hbm [shape: f32[8,8,384], index: 1, kind: input, shape index: {}]
  %s2 = inlined_call_operand.hbm [shape: f32[128,384], index: 2, kind: input, shape index: {}]
  %s3 = inlined_call_operand.vmem [shape: f32[1,384], index: 3, kind: input, shape index: {}]
  %s4 = inlined_call_operand.hbm [shape: f32[8,8,128], index: 4, kind: output, shape index: {0}]
  %s5 = inlined_call_operand.hbm [shape: f32[1,8,128], index: 5, kind: output, shape index: {1}]
  %6 = xla_tuple %s4, %s5
  %s7 = sld [smem:[#allocation0]]
  $region73: #{_gru_pallas.1} parent=0
    _
  %s9 = ssub.s32 1, %s7
  %s10 = scalar_select 0, %s9, %s7
  $region1: #{_gru_pallas.1} parent=0
    #allocation3 [shape = 'u8[98304]{0}', space=vmem, size = 0x18000, scoped, tag = 'input window, operand 1']
    #allocation4 [shape = 's32[2]{0}', space=sflag, size = 0x8, scoped, tag = 'scoped memory for _gru_pallas.1']
    #allocation5 [shape = 's32[2]{0}', space=sflag, size = 0x8, scoped, tag = 'scoped memory for _gru_pallas.1']
    #allocation6 [shape = 'u8[196608]{0}', space=vmem, size = 0x30000, scoped, tag = 'input window, operand 2, single buffered']
    #allocation7 [shape = 's32[1]{0}', space=sflag, size = 0x4, scoped, tag = 'scoped memory for _gru_pallas.1']
    #allocation8 [shape = 'u8[32768]{0}', space=vmem, size = 0x8000, scoped, tag = 'output window, operand 0']
    #allocation9 [shape = 'u8[4096]{0}', space=vmem, size = 0x1000, scoped, tag = 'output window, operand 1, single buffered']
    #allocation10 [shape = 's32[1]{0}', space=sflag, size = 0x4, scoped, tag = 'scoped memory for _gru_pallas.1']
    %11 = vsyncpa [#allocation4], 0
    %s12 = scalar_lea.sflag [#allocation4], 1
    %13 = vsyncpa %s12, 0
    %14 = vsyncpa [#allocation7], 0
    %15 = vsyncpa [#allocation5], 0
    %s16 = scalar_lea.sflag [#allocation5], 1
    %17 = vsyncpa %s16, 0
    %18 = vsyncpa [#allocation10], 0
    loop: start=0, step=1, limit=4
    $region2: #{_gru_pallas.1} parent=1 // loop_pre_header
      _
    $region3: #{_gru_pallas.1} parent=1 // loop_header
      %s20 = sphi 0, %s24
      %p21 = scmp.ge.s32.totalorder %s20, 4
      %s27 = sphi 0, %s39
      %s28 = sphi 0, %s35
      %s29 = sphi 0, %s27
      %s30 = sphi 0, %s28
      %s31 = sphi 0, %s29
      %s32 = sphi 0, %s30
      %s42 = sphi 0, %s44
      %s45 = sphi 0, %s42
      %s46 = sphi 0, %s45
      %s62 = sphi 0, %s46
      %s70 = sphi 0, %s72
      %s73 = sphi 0, %s70
      %s74 = sphi 0, %s73
      %s90 = sphi 0, %s74
      %s94 = sphi 0, %s94
      %s96 = sphi 0, %s94
      %s97 = sphi 0, %s96
      %s111 = sphi 0, %s97
      %s115 = sphi 0, %s115
      %s117 = sphi 0, %s115
      %s118 = sphi 0, %s117
      %s132 = sphi 0, %s118
      %s140 = sphi 0, %s142
      %s143 = sphi 0, %s140
      %s144 = sphi 0, %s143
      %s160 = sphi 0, %s144
      %s166 = sphi 0, %s168
      %s169 = sphi 0, %s166
      %s170 = sphi 0, %s169
      %s186 = sphi 0, %s170
    $region4: #{_gru_pallas.1} parent=1 // loop_header_branch
      %23 = sbr.rel (%p21) target = $region8
    $region5: #{_gru_pallas.1} parent=1 // loop_body
      %s25 = ssub.s32 %s20, 1
      %s26 = ssub.s32 %s20, 2
      %s33 = sadd.s32 1, %s28
      %p34 = scmp.ge.s32.totalorder %s33, 2
      %s35 = scalar_select %p34, 0, %s33
      %s36 = sadd.s32 1, %s27
      %s37 = scalar_select %p34, %s36, %s27
      %p38 = scmp.ge.s32.totalorder %s37, 1
      %s39 = scalar_select %p38, 0, %s37
      %s40 = ssub.s32 %s27, %s39
      %p41 = scmp.eq.s32.totalorder %s40, 0
      %s43 = sadd.s32 %s42, 1
      %s44 = scalar_select %p41, %s42, %s43
      %p47 = pneg %p41
      %p48 = scmp.eq.s32.totalorder %s20, 1
      %p49 = por %p47, %p48
      %p50 = scmp.ne.s32.totalorder %s42, %s45
      %p51 = scmp.eq.s32.totalorder %s20, 0
      %p52 = por %p50, %p51
      %p53 = scmp.ne.s32.totalorder %s42, %s45
      %p54 = scmp.eq.s32.totalorder %s25, 1
      %p55 = por %p53, %p54
      %p56 = scmp.ne.s32.totalorder %s45, %s46
      %p57 = scmp.eq.s32.totalorder %s25, 0
      %p58 = por %p56, %p57
      %p59 = scmp.ne.s32.totalorder %s45, %s46
      %p60 = scmp.eq.s32.totalorder %s26, 1
      %p61 = por %p59, %p60
      %p63 = scmp.ne.s32.totalorder %s46, %s62
      %p64 = scmp.eq.s32.totalorder %s26, 0
      %p65 = por %p63, %p64
      %s66 = ssub.s32 %s28, %s35
      %s67 = ssub.s32 %s27, %s39
      %s68 = sor.u32 %s66, %s67
      %p69 = scmp.eq.s32.totalorder %s68, 0
      %s71 = sadd.s32 %s70, 1
      %s72 = scalar_select %p69, %s70, %s71
      %p75 = pneg %p69
      %p76 = scmp.eq.s32.totalorder %s20, 1
      %p77 = por %p75, %p76
      %p78 = scmp.ne.s32.totalorder %s70, %s73
      %p79 = scmp.eq.s32.totalorder %s20, 0
      %p80 = por %p78, %p79
      %p81 = scmp.ne.s32.totalorder %s70, %s73
      %p82 = scmp.eq.s32.totalorder %s25, 1
      %p83 = por %p81, %p82
      %p84 = scmp.ne.s32.totalorder %s73, %s74
      %p85 = scmp.eq.s32.totalorder %s25, 0
      %p86 = por %p84, %p85
      %p87 = scmp.ne.s32.totalorder %s73, %s74
      %p88 = scmp.eq.s32.totalorder %s26, 1
      %p89 = por %p87, %p88
      %p91 = scmp.ne.s32.totalorder %s74, %s90
      %p92 = scmp.eq.s32.totalorder %s26, 0
      %p93 = por %p91, %p92
      %s95 = sadd.s32 %s94, 1
      %p98 = scmp.eq.s32.totalorder %s20, 1
      %p99 = scmp.ne.s32.totalorder %s94, %s96
      %p100 = scmp.eq.s32.totalorder %s20, 0
      %p101 = por %p99, %p100
      %p102 = scmp.ne.s32.totalorder %s94, %s96
      %p103 = scmp.eq.s32.totalorder %s25, 1
      %p104 = por %p102, %p103
      %p105 = scmp.ne.s32.totalorder %s96, %s97
      %p106 = scmp.eq.s32.totalorder %s25, 0
      %p107 = por %p105, %p106
      %p108 = scmp.ne.s32.totalorder %s96, %s97
      %p109 = scmp.eq.s32.totalorder %s26, 1
      %p110 = por %p108, %p109
      %p112 = scmp.ne.s32.totalorder %s97, %s111
      %p113 = scmp.eq.s32.totalorder %s26, 0
      %p114 = por %p112, %p113
      %s116 = sadd.s32 %s115, 1
      %p119 = scmp.eq.s32.totalorder %s20, 1
      %p120 = scmp.ne.s32.totalorder %s115, %s117
      %p121 = scmp.eq.s32.totalorder %s20, 0
      %p122 = por %p120, %p121
      %p123 = scmp.ne.s32.totalorder %s115, %s117
      %p124 = scmp.eq.s32.totalorder %s25, 1
      %p125 = por %p123, %p124
      %p126 = scmp.ne.s32.totalorder %s117, %s118
      %p127 = scmp.eq.s32.totalorder %s25, 0
      %p128 = por %p126, %p127
      %p129 = scmp.ne.s32.totalorder %s117, %s118
      %p130 = scmp.eq.s32.totalorder %s26, 1
      %p131 = por %p129, %p130
      %p133 = scmp.ne.s32.totalorder %s118, %s132
      %p134 = scmp.eq.s32.totalorder %s26, 0
      %p135 = por %p133, %p134
      %s136 = ssub.s32 %s28, %s35
      %s137 = ssub.s32 %s27, %s39
      %s138 = sor.u32 %s136, %s137
      %p139 = scmp.eq.s32.totalorder %s138, 0
      %s141 = sadd.s32 %s140, 1
      %s142 = scalar_select %p139, %s140, %s141
      %p145 = pneg %p139
      %p146 = scmp.eq.s32.totalorder %s20, 1
      %p147 = por %p145, %p146
      %p148 = scmp.ne.s32.totalorder %s140, %s143
      %p149 = scmp.eq.s32.totalorder %s20, 0
      %p150 = por %p148, %p149
      %p151 = scmp.ne.s32.totalorder %s140, %s143
      %p152 = scmp.eq.s32.totalorder %s25, 1
      %p153 = por %p151, %p152
      %p154 = scmp.ne.s32.totalorder %s143, %s144
      %p155 = scmp.eq.s32.totalorder %s25, 0
      %p156 = por %p154, %p155
      %p157 = scmp.ne.s32.totalorder %s143, %s144
      %p158 = scmp.eq.s32.totalorder %s26, 1
      %p159 = por %p157, %p158
      %p161 = scmp.ne.s32.totalorder %s144, %s160
      %p162 = scmp.eq.s32.totalorder %s26, 0
      %p163 = por %p161, %p162
      %s164 = ssub.s32 %s27, %s39
      %p165 = scmp.eq.s32.totalorder %s164, 0
      %s167 = sadd.s32 %s166, 1
      %s168 = scalar_select %p165, %s166, %s167
      %p171 = pneg %p165
      %p172 = scmp.eq.s32.totalorder %s20, 1
      %p173 = por %p171, %p172
      %p174 = scmp.ne.s32.totalorder %s166, %s169
      %p175 = scmp.eq.s32.totalorder %s20, 0
      %p176 = por %p174, %p175
      %p177 = scmp.ne.s32.totalorder %s166, %s169
      %p178 = scmp.eq.s32.totalorder %s25, 1
      %p179 = por %p177, %p178
      %p180 = scmp.ne.s32.totalorder %s169, %s170
      %p181 = scmp.eq.s32.totalorder %s25, 0
      %p182 = por %p180, %p181
      %p183 = scmp.ne.s32.totalorder %s169, %s170
      %p184 = scmp.eq.s32.totalorder %s26, 1
      %p185 = por %p183, %p184
      %p187 = scmp.ne.s32.totalorder %s170, %s186
      %p188 = scmp.eq.s32.totalorder %s26, 0
      %p189 = por %p187, %p188
      %p190 = scmp.le.s32.totalorder 1, %s20
      %p191 = scmp.lt.s32.totalorder %s20, 3
      %p192 = pnand %p190, %p191
      %p193 = pneg %p192
      // Predicated region
      $region9: #{_gru_pallas.1} parent=5 // pred_check
        _
      $region10: #{_gru_pallas.1} parent=5 // pred_check_branch
        %195 = sbr.rel (%p192) target = $region12
      $region11: #{_gru_pallas.1} parent=5 // pred_region
        %s196 = ssub.s32 %s20, 1
        // Predicated region
        $region13: #{_gru_pallas.1} parent=11 // pred_check
          %p197 = pneg %p58
        $region14: #{_gru_pallas.1} parent=11 // pred_check_branch
          %199 = sbr.rel (%p197) target = $region16
        $region15: #{_gru_pallas.1} parent=11 // pred_region
          %p200 = scmp.lt.s32.totalorder %s29, 0
          %s201 = scalar_select %p200, %s29, 0
          %s202 = smul.addr %s201, 8
          %s203 = scalar_lea.vmem %s0, %s202
        $region16: #{_gru_pallas.1} parent=11 // pred_fallthru
          _
        // Predicated region
        $region17: #{_gru_pallas.1} parent=11 // pred_check
          %p204 = pneg %p107
        $region18: #{_gru_pallas.1} parent=11 // pred_check_branch
          %206 = sbr.rel (%p204) target = $region20
        $region19: #{_gru_pallas.1} parent=11 // pred_region
          %s208 = ssub.s32 6144, 6144
          %209 = vsyncadd [#allocation7], %s208
          %s210 = sshll.u32 [#allocation6], 4
          %s211 = int_to_ptr.vmem [resolvable:$true] %s210
          %216 = dma.hbm_to_vmem [thread:$0]  %s2, 6144, %s211, [#allocation7], 384, 384, 24
        $region20: #{_gru_pallas.1} parent=11 // pred_fallthru
          _
        // Predicated region
        $region21: #{_gru_pallas.1} parent=11 // pred_check
          %p217 = pneg %p128
        $region22: #{_gru_pallas.1} parent=11 // pred_check_branch
          %219 = sbr.rel (%p217) target = $region24
        $region23: #{_gru_pallas.1} parent=11 // pred_region
          _
        $region24: #{_gru_pallas.1} parent=11 // pred_fallthru
          _
      $region12: #{_gru_pallas.1} parent=5 // pred_fallthru
        _
      %p220 = scmp.lt.s32.totalorder %s20, 2
      // Predicated region
      $region25: #{_gru_pallas.1} parent=5 // pred_check
        %p221 = pneg %p220
      $region26: #{_gru_pallas.1} parent=5 // pred_check_branch
        %223 = sbr.rel (%p221) target = $region28
      $region27: #{_gru_pallas.1} parent=5 // pred_region
        // Predicated region
        $region29: #{_gru_pallas.1} parent=27 // pred_check
          %p224 = pneg %p80
        $region30: #{_gru_pallas.1} parent=27 // pred_check_branch
          %226 = sbr.rel (%p224) target = $region32
        $region31: #{_gru_pallas.1} parent=27 // pred_region
          %s227 = sand.u32 %s70, 1
          %s228 = scalar_lea.sflag [#allocation4], %s227
          %s229 = sand.u32 %s70, 1
          %s230 = smul.addr %s229, 96
          %s231 = scalar_lea.vmem [#allocation3], %s230
          %s232 = smul.u32 4, %s28
          %s234 = ssub.s32 1536, 1536
          %235 = vsyncadd %s228, %s234
          %s236 = smul.addr %s27, 3
          %s237 = smul.addr %s232, 3
          %s238 = sadd.s32 %s236, %s237
          %s239 = smul.addr %s238, 128
          %s240 = scalar_lea.hbm %s1, %s239
          %s241 = sshll.u32 %s231, 4
          %s242 = int_to_ptr.vmem [resolvable:$true] %s241
          %247 = dma.hbm_to_vmem [thread:$0]  %s240, 1536, %s242, %s228, 384, 384, 24
        $region32: #{_gru_pallas.1} parent=27 // pred_fallthru
          _
      $region28: #{_gru_pallas.1} parent=5 // pred_fallthru
        _
      %p248 = scmp.le.s32.totalorder 1, %s20
      %p249 = scmp.lt.s32.totalorder %s20, 3
      %p250 = pnand %p248, %p249
      %p251 = pneg %p250
      // Predicated region
      $region33: #{_gru_pallas.1} parent=5 // pred_check
        _
      $region34: #{_gru_pallas.1} parent=5 // pred_check_branch
        %253 = sbr.rel (%p250) target = $region36
      $region35: #{_gru_pallas.1} parent=5 // pred_region
        %s254 = ssub.s32 %s20, 1
        %s255 = sand.u32 %s73, 1
        %s256 = scalar_lea.sflag [#allocation4], %s255
        %s257 = sand.u32 %s73, 1
        %s258 = smul.addr %s257, 96
        %s259 = scalar_lea.vmem [#allocation3], %s258
        // Predicated region
        $region37: #{_gru_pallas.1} parent=35 // pred_check
          %p260 = pneg %p86
        $region38: #{_gru_pallas.1} parent=35 // pred_check_branch
          %262 = sbr.rel (%p260) target = $region40
        $region39: #{_gru_pallas.1} parent=35 // pred_region
          %263 = dma.done %s256, 1536
        $region40: #{_gru_pallas.1} parent=35 // pred_fallthru
          _
        // Predicated region
        $region41: #{_gru_pallas.1} parent=35 // pred_check
          %p264 = pneg %p107
        $region42: #{_gru_pallas.1} parent=35 // pred_check_branch
          %266 = sbr.rel (%p264) target = $region44
        $region43: #{_gru_pallas.1} parent=35 // pred_region
          %267 = dma.done [#allocation7], 6144
        $region44: #{_gru_pallas.1} parent=35 // pred_fallthru
          _
        %p268 = scmp.lt.s32.totalorder %s29, 0
        %s269 = scalar_select %p268, %s29, 0
        %s270 = smul.addr %s269, 8
        %s271 = scalar_lea.vmem %s0, %s270
        %p272 = pneg %p58
        %p273 = pneg %p55
        %s274 = sand.u32 %s73, 1
        %s275 = scalar_lea.sflag [#allocation4], %s274
        %s276 = sand.u32 %s73, 1
        %s277 = smul.addr %s276, 96
        %s278 = scalar_lea.vmem [#allocation3], %s277
        %p279 = pneg %p86
        %p280 = pneg %p83
        %p281 = pneg %p107
        %p282 = pneg %p104
        %p283 = pneg %p128
        %p284 = pneg %p125
        %p285 = pneg %p156
        %p286 = pneg %p153
        %s287 = sand.u32 %s143, 1
        %s288 = scalar_lea.sflag [#allocation5], %s287
        %s289 = sand.u32 %s143, 1
        %s290 = smul.addr %s289, 32
        %s291 = scalar_lea.vmem [#allocation8], %s290
        %p292 = pneg %p182
        %p293 = pneg %p179
        %p294 = scmp.lt.s32.totalorder %s29, 0
        %s295 = scalar_select %p294, %s29, 0
        %s296 = smul.addr %s295, 8
        %s297 = scalar_lea.vmem %s0, %s296
        %s298 = smul.u32 4, %s30
        %s299 = smul.u32 4, %s30
        %p300 = scmp.eq.s32.totalorder %s30, 0
        // Predicated region
        $region45: #{_gru_pallas.1} parent=35 // pred_check
          %p301 = pneg %p300
        $region46: #{_gru_pallas.1} parent=35 // pred_check_branch
          %303 = sbr.rel (%p301) target = $region48
        $region47: #{_gru_pallas.1} parent=35 // pred_region
          %304 = vst [vmem:[#allocation2] sm:$0xff] 0.0
        $region48: #{_gru_pallas.1} parent=35 // pred_fallthru
          _
        %v305 = vld [vmem:[#allocation6] sm:$0xff]
        %v306 = vld [vmem:[#allocation6 + $0x8] sm:$0xff]
        %v307 = vld [vmem:[#allocation6 + $0x10] sm:$0xff]
        %v308 = vld [vmem:[#allocation6 + $0x18] sm:$0xff]
        %v309 = vld [vmem:[#allocation6 + $0x20] sm:$0xff]
        %v310 = vld [vmem:[#allocation6 + $0x28] sm:$0xff]
        %v311 = vld [vmem:[#allocation6 + $0x30] sm:$0xff]
        %v312 = vld [vmem:[#allocation6 + $0x38] sm:$0xff]
        %v313 = vld [vmem:[#allocation6 + $0x40] sm:$0xff]
        %v314 = vld [vmem:[#allocation6 + $0x48] sm:$0xff]
        %v315 = vld [vmem:[#allocation6 + $0x50] sm:$0xff]
        %v316 = vld [vmem:[#allocation6 + $0x58] sm:$0xff]
        %v317 = vld [vmem:[#allocation6 + $0x60] sm:$0xff]
        %v318 = vld [vmem:[#allocation6 + $0x68] sm:$0xff]
        %v319 = vld [vmem:[#allocation6 + $0x70] sm:$0xff]
        %v320 = vld [vmem:[#allocation6 + $0x78] sm:$0xff]
        %v321 = vld [vmem:[#allocation6 + $0x80] sm:$0xff]
        %v322 = vld [vmem:[#allocation6 + $0x88] sm:$0xff]
        %v323 = vld [vmem:[#allocation6 + $0x90] sm:$0xff]
        %v324 = vld [vmem:[#allocation6 + $0x98] sm:$0xff]
        %v325 = vld [vmem:[#allocation6 + $0xa0] sm:$0xff]
        %v326 = vld [vmem:[#allocation6 + $0xa8] sm:$0xff]
        %v327 = vld [vmem:[#allocation6 + $0xb0] sm:$0xff]
        %v328 = vld [vmem:[#allocation6 + $0xb8] sm:$0xff]
        %v329 = vld [vmem:[#allocation6 + $0xc0] sm:$0xff]
        %v330 = vld [vmem:[#allocation6 + $0xc8] sm:$0xff]
        %v331 = vld [vmem:[#allocation6 + $0xd0] sm:$0xff]
        %v332 = vld [vmem:[#allocation6 + $0xd8] sm:$0xff]
        %v333 = vld [vmem:[#allocation6 + $0xe0] sm:$0xff]
        %v334 = vld [vmem:[#allocation6 + $0xe8] sm:$0xff]
        %v335 = vld [vmem:[#allocation6 + $0xf0] sm:$0xff]
        %v336 = vld [vmem:[#allocation6 + $0xf8] sm:$0xff]
        %v337 = vld [vmem:[#allocation6 + $0x100] sm:$0xff]
        %v338 = vld [vmem:[#allocation6 + $0x108] sm:$0xff]
        %v339 = vld [vmem:[#allocation6 + $0x110] sm:$0xff]
        %v340 = vld [vmem:[#allocation6 + $0x118] sm:$0xff]
        %v341 = vld [vmem:[#allocation6 + $0x120] sm:$0xff]
        %v342 = vld [vmem:[#allocation6 + $0x128] sm:$0xff]
        %v343 = vld [vmem:[#allocation6 + $0x130] sm:$0xff]
        %v344 = vld [vmem:[#allocation6 + $0x138] sm:$0xff]
        %v345 = vld [vmem:[#allocation6 + $0x140] sm:$0xff]
        %v346 = vld [vmem:[#allocation6 + $0x148] sm:$0xff]
        %v347 = vld [vmem:[#allocation6 + $0x150] sm:$0xff]
        %v348 = vld [vmem:[#allocation6 + $0x158] sm:$0xff]
        %v349 = vld [vmem:[#allocation6 + $0x160] sm:$0xff]
        %v350 = vld [vmem:[#allocation6 + $0x168] sm:$0xff]
        %v351 = vld [vmem:[#allocation6 + $0x170] sm:$0xff]
        %v352 = vld [vmem:[#allocation6 + $0x178] sm:$0xff]
        %v353 = vld [vmem:[%s3] sm:$0x7]
        %v354 = vld [vmem:[%s297] sm:$0xff]
        %s355 = smul.u32 %s30, 4
        %v356 = vld [vmem:[#allocation2] sm:$0xff]
        %v357 = vld [vmem:[%s259] sm:$0xff]
        %v358 = vld [vmem:[%s259 + $0x8] sm:$0xff]
        %v359 = vld [vmem:[%s259 + $0x10] sm:$0xff]
        %v361 = vlaneseq
        %v362 = vshrl.u32 %v361, 7
        %v363 = vsub.s32 0, %v362
        %v364 = vrot.slane %v353, %v363
        %v365 = vlaneseq
        %v366 = vshrl.u32 %v365, 7
        %v367 = vsub.s32 1, %v366
        %v368 = vrot.slane %v353, %v367
        %v369 = vlaneseq
        %v370 = vshrl.u32 %v369, 7
        %v371 = vsub.s32 2, %v370
        %v372 = vrot.slane %v353, %v371
        %376 = vmatprep.subr.mxu0 %v306
        %377 = vmatpush1.msra.mxu0 %v305
        %378 = vmatprep.subr.mxu0 %v309
        %379 = vmatpush1.msra.mxu0 %v308
        %380 = vmatprep.subr.mxu0 %v312
        %381 = vmatpush1.msra.mxu0 %v311
        %382 = vmatprep.subr.mxu0 %v315
        %383 = vmatpush1.msra.mxu0 %v314
        %384 = vmatprep.subr.mxu0 %v318
        %385 = vmatpush1.msra.mxu0 %v317
        %386 = vmatprep.subr.mxu0 %v321
        %387 = vmatpush1.msra.mxu0 %v320
        %388 = vmatprep.subr.mxu0 %v324
        %389 = vmatpush1.msra.mxu0 %v323
        %390 = vmatprep.subr.mxu0 %v327
        %391 = vmatpush1.msra.mxu0 %v326
        %392 = vmatprep.subr.mxu0 %v330
        %393 = vmatpush1.msra.mxu0 %v329
        %394 = vmatprep.subr.mxu0 %v333
        %395 = vmatpush1.msra.mxu0 %v332
        %396 = vmatprep.subr.mxu0 %v336
        %397 = vmatpush1.msra.mxu0 %v335
        %398 = vmatprep.subr.mxu0 %v339
        %399 = vmatpush1.msra.mxu0 %v338
        %400 = vmatprep.subr.mxu0 %v342
        %401 = vmatpush1.msra.mxu0 %v341
        %402 = vmatprep.subr.mxu0 %v345
        %403 = vmatpush1.msra.mxu0 %v344
        %404 = vmatprep.subr.mxu0 %v348
        %405 = vmatpush1.msra.mxu0 %v347
        %406 = vmatprep.subr.mxu0 %v351
        %407 = vmatpush1.msra.mxu0 %v350
        %408 = vmatprep.subr.mxu0 0.0
        %409 = vmatpush1.msra.mxu0 0.0
        %410 = vmatprep.subr.mxu0 0.0
        %411 = vmatpush1.msra.mxu0 0.0
        %412 = vmatprep.subr.mxu0 0.0
        %413 = vmatpush1.msra.mxu0 0.0
        %414 = vmatprep.subr.mxu0 0.0
        %415 = vmatpush1.msra.mxu0 0.0
        %416 = vmatprep.subr.mxu0 0.0
        %417 = vmatpush1.msra.mxu0 0.0
        %418 = vmatprep.subr.mxu0 0.0
        %419 = vmatpush1.msra.mxu0 0.0
        %420 = vmatprep.subr.mxu0 0.0
        %421 = vmatpush1.msra.mxu0 0.0
        %422 = vmatprep.subr.mxu0 0.0
        %423 = vmatpush1.msra.mxu0 0.0
        %424 = vmatprep.subr.mxu0 0.0
        %425 = vmatpush1.msra.mxu0 0.0
        %426 = vmatprep.subr.mxu0 0.0
        %427 = vmatpush1.msra.mxu0 0.0
        %428 = vmatprep.subr.mxu0 0.0
        %429 = vmatpush1.msra.mxu0 0.0
        %430 = vmatprep.subr.mxu0 0.0
        %431 = vmatpush1.msra.mxu0 0.0
        %432 = vmatprep.subr.mxu0 0.0
        %433 = vmatpush1.msra.mxu0 0.0
        %434 = vmatprep.subr.mxu0 0.0
        %435 = vmatpush1.msra.mxu0 0.0
        %436 = vmatprep.subr.mxu0 0.0
        %437 = vmatpush1.msra.mxu0 0.0
        %438 = vmatprep.subr.mxu0 0.0
        %439 = vmatpush1.msra.mxu0 0.0
        %440 = vmatprep.mubr.f32.mxu0 0.0
        %441 = vmatmul.mubr.f32.gmra.mrb[0].mxu0 %v356
        %v442 = vpop.f32.mrb[0].mxu0
        %v443 = vadd.f32 %v364, %v442
        %v444 = vpop.f32.mrb[0].mxu0
        %v445 = vadd.f32 %v368, %v444
        %446 = vdwg.mxu0
        %447 = vmatprep.subr.mxu0 0.0
        %448 = vmatpush1.msra.mxu0 %v307
        %449 = vmatprep.subr.mxu0 0.0
        %450 = vmatpush1.msra.mxu0 %v310
        %451 = vmatprep.subr.mxu0 0.0
        %452 = vmatpush1.msra.mxu0 %v313
        %453 = vmatprep.subr.mxu0 0.0
        %454 = vmatpush1.msra.mxu0 %v316
        %455 = vmatprep.subr.mxu0 0.0
        %456 = vmatpush1.msra.mxu0 %v319
        %457 = vmatprep.subr.mxu0 0.0
        %458 = vmatpush1.msra.mxu0 %v322
        %459 = vmatprep.subr.mxu0 0.0
        %460 = vmatpush1.msra.mxu0 %v325
        %461 = vmatprep.subr.mxu0 0.0
        %462 = vmatpush1.msra.mxu0 %v328
        %463 = vmatprep.subr.mxu0 0.0
        %464 = vmatpush1.msra.mxu0 %v331
        %465 = vmatprep.subr.mxu0 0.0
        %466 = vmatpush1.msra.mxu0 %v334
        %467 = vmatprep.subr.mxu0 0.0
        %468 = vmatpush1.msra.mxu0 %v337
        %469 = vmatprep.subr.mxu0 0.0
        %470 = vmatpush1.msra.mxu0 %v340
        %471 = vmatprep.subr.mxu0 0.0
        %472 = vmatpush1.msra.mxu0 %v343
        %473 = vmatprep.subr.mxu0 0.0
        %474 = vmatpush1.msra.mxu0 %v346
        %475 = vmatprep.subr.mxu0 0.0
        %476 = vmatpush1.msra.mxu0 %v349
        %477 = vmatprep.subr.mxu0 0.0
        %478 = vmatpush1.msra.mxu0 %v352
        %479 = vmatprep.subr.mxu0 0.0
        %480 = vmatpush1.msra.mxu0 0.0
        %481 = vmatprep.subr.mxu0 0.0
        %482 = vmatpush1.msra.mxu0 0.0
        %483 = vmatprep.subr.mxu0 0.0
        %484 = vmatpush1.msra.mxu0 0.0
        %485 = vmatprep.subr.mxu0 0.0
        %486 = vmatpush1.msra.mxu0 0.0
        %487 = vmatprep.subr.mxu0 0.0
        %488 = vmatpush1.msra.mxu0 0.0
        %489 = vmatprep.subr.mxu0 0.0
        %490 = vmatpush1.msra.mxu0 0.0
        %491 = vmatprep.subr.mxu0 0.0
        %492 = vmatpush1.msra.mxu0 0.0
        %493 = vmatprep.subr.mxu0 0.0
        %494 = vmatpush1.msra.mxu0 0.0
        %495 = vmatprep.subr.mxu0 0.0
        %496 = vmatpush1.msra.mxu0 0.0
        %497 = vmatprep.subr.mxu0 0.0
        %498 = vmatpush1.msra.mxu0 0.0
        %499 = vmatprep.subr.mxu0 0.0
        %500 = vmatpush1.msra.mxu0 0.0
        %501 = vmatprep.subr.mxu0 0.0
        %502 = vmatpush1.msra.mxu0 0.0
        %503 = vmatprep.subr.mxu0 0.0
        %504 = vmatpush1.msra.mxu0 0.0
        %505 = vmatprep.subr.mxu0 0.0
        %506 = vmatpush1.msra.mxu0 0.0
        %507 = vmatprep.subr.mxu0 0.0
        %508 = vmatpush1.msra.mxu0 0.0
        %509 = vmatprep.subr.mxu0 0.0
        %510 = vmatpush1.msra.mxu0 0.0
        %511 = vmatprep.mubr.f32.mxu0 0.0
        %512 = vmatmul.mubr.f32.gmra.mrb[0].mxu0 %v356
        %v513 = vpop.f32.mrb[0].mxu0
        %v514 = vadd.f32 %v372, %v513
        %v515 = vpop.f32.mrb[0].mxu0
        %516 = vdwg.mxu0
        %v517 = vadd.f32 %v357, %v443
        %v518 = vxor.u32 %v517, 2147483648
        %v519 = vmul.f32 %v518, 1.442695
        %v520 = vpow.pop %v519
        %v521 = vadd.f32 %v520, 1.0
        %v522 = vrcp.pop %v521
        %v523 = vmul.f32 1.0, %v522
        %v524 = vadd.f32 %v358, %v445
        %v525 = vxor.u32 %v524, 2147483648
        %v526 = vmul.f32 %v525, 1.442695
        %v527 = vpow.pop %v526
        %v528 = vadd.f32 %v527, 1.0
        %v529 = vrcp.pop %v528
        %v530 = vmul.f32 1.0, %v529
        %v531 = vmul.f32 %v523, %v514
        %v532 = vadd.f32 %v359, %v531
        %v533 = vtanh.pop %v532
        %v534 = vsub.f32 1.0, %v530
        %v535 = vmul.f32 %v534, %v533
        %v536 = vmul.f32 %v530, %v356
        %v537 = vadd.f32 %v535, %v536
        %v538 = vstv %s355
        %vm539 = vcmp.lt.s32.totalorder %v538, %v354
        %v540 = vsel %vm539, 1, 0
        %541 = vset.pattern.permute.xlu0 0
        %542 = vperm.xlu0 %541, %v540
        %v543 = vpop.permute.xlu0 %542
        %vm544 = vcmp.eq.s32.totalorder %v543, 1
        %v545 = vsel %vm544, %v537, %v356
        %v546 = vsel %vm544, %v537, 0.0
        %547 = vst [vmem:[%s291] sm:$0xff] %v546
        %s548 = scalar_lea.vmem %s259, 24 [#allocation3]
        %v549 = vld [vmem:[%s548] sm:$0xff]
        %v550 = vld [vmem:[%s548 + $0x8] sm:$0xff]
        %v551 = vld [vmem:[%s548 + $0x10] sm:$0xff]
        %552 = vmatprep.subr.mxu0 %v306
        %553 = vmatpush1.msra.mxu0 %v305
        %554 = vmatprep.subr.mxu0 %v309
        %555 = vmatpush1.msra.mxu0 %v308
        %556 = vmatprep.subr.mxu0 %v312
        %557 = vmatpush1.msra.mxu0 %v311
        %558 = vmatprep.subr.mxu0 %v315
        %559 = vmatpush1.msra.mxu0 %v314
        %560 = vmatprep.subr.mxu0 %v318
        %561 = vmatpush1.msra.mxu0 %v317
        %562 = vmatprep.subr.mxu0 %v321
        %563 = vmatpush1.msra.mxu0 %v320
        %564 = vmatprep.subr.mxu0 %v324
        %565 = vmatpush1.msra.mxu0 %v323
        %566 = vmatprep.subr.mxu0 %v327
        %567 = vmatpush1.msra.mxu0 %v326
        %568 = vmatprep.subr.mxu0 %v330
        %569 = vmatpush1.msra.mxu0 %v329
        %570 = vmatprep.subr.mxu0 %v333
        %571 = vmatpush1.msra.mxu0 %v332
        %572 = vmatprep.subr.mxu0 %v336
        %573 = vmatpush1.msra.mxu0 %v335
        %574 = vmatprep.subr.mxu0 %v339
        %575 = vmatpush1.msra.mxu0 %v338
        %576 = vmatprep.subr.mxu0 %v342
        %577 = vmatpush1.msra.mxu0 %v341
        %578 = vmatprep.subr.mxu0 %v345
        %579 = vmatpush1.msra.mxu0 %v344
        %580 = vmatprep.subr.mxu0 %v348
        %581 = vmatpush1.msra.mxu0 %v347
        %582 = vmatprep.subr.mxu0 %v351
        %583 = vmatpush1.msra.mxu0 %v350
        %584 = vmatprep.subr.mxu0 0.0
        %585 = vmatpush1.msra.mxu0 0.0
        %586 = vmatprep.subr.mxu0 0.0
        %587 = vmatpush1.msra.mxu0 0.0
        %588 = vmatprep.subr.mxu0 0.0
        %589 = vmatpush1.msra.mxu0 0.0
        %590 = vmatprep.subr.mxu0 0.0
        %591 = vmatpush1.msra.mxu0 0.0
        %592 = vmatprep.subr.mxu0 0.0
        %593 = vmatpush1.msra.mxu0 0.0
        %594 = vmatprep.subr.mxu0 0.0
        %595 = vmatpush1.msra.mxu0 0.0
        %596 = vmatprep.subr.mxu0 0.0
        %597 = vmatpush1.msra.mxu0 0.0
        %598 = vmatprep.subr.mxu0 0.0
        %599 = vmatpush1.msra.mxu0 0.0
        %600 = vmatprep.subr.mxu0 0.0
        %601 = vmatpush1.msra.mxu0 0.0
        %602 = vmatprep.subr.mxu0 0.0
        %603 = vmatpush1.msra.mxu0 0.0
        %604 = vmatprep.subr.mxu0 0.0
        %605 = vmatpush1.msra.mxu0 0.0
        %606 = vmatprep.subr.mxu0 0.0
        %607 = vmatpush1.msra.mxu0 0.0
        %608 = vmatprep.subr.mxu0 0.0
        %609 = vmatpush1.msra.mxu0 0.0
        %610 = vmatprep.subr.mxu0 0.0
        %611 = vmatpush1.msra.mxu0 0.0
        %612 = vmatprep.subr.mxu0 0.0
        %613 = vmatpush1.msra.mxu0 0.0
        %614 = vmatprep.subr.mxu0 0.0
        %615 = vmatpush1.msra.mxu0 0.0
        %616 = vmatprep.mubr.f32.mxu0 0.0
        %617 = vmatmul.mubr.f32.gmra.mrb[0].mxu0 %v545
        %v618 = vpop.f32.mrb[0].mxu0
        %v619 = vadd.f32 %v364, %v618
        %v620 = vpop.f32.mrb[0].mxu0
        %v621 = vadd.f32 %v368, %v620
        %622 = vdwg.mxu0
        %623 = vmatprep.subr.mxu0 0.0
        %624 = vmatpush1.msra.mxu0 %v307
        %625 = vmatprep.subr.mxu0 0.0
        %626 = vmatpush1.msra.mxu0 %v310
        %627 = vmatprep.subr.mxu0 0.0
        %628 = vmatpush1.msra.mxu0 %v313
        %629 = vmatprep.subr.mxu0 0.0
        %630 = vmatpush1.msra.mxu0 %v316
        %631 = vmatprep.subr.mxu0 0.0
        %632 = vmatpush1.msra.mxu0 %v319
        %633 = vmatprep.subr.mxu0 0.0
        %634 = vmatpush1.msra.mxu0 %v322
        %635 = vmatprep.subr.mxu0 0.0
        %636 = vmatpush1.msra.mxu0 %v325
        %637 = vmatprep.subr.mxu0 0.0
        %638 = vmatpush1.msra.mxu0 %v328
        %639 = vmatprep.subr.mxu0 0.0
        %640 = vmatpush1.msra.mxu0 %v331
        %641 = vmatprep.subr.mxu0 0.0
        %642 = vmatpush1.msra.mxu0 %v334
        %643 = vmatprep.subr.mxu0 0.0
        %644 = vmatpush1.msra.mxu0 %v337
        %645 = vmatprep.subr.mxu0 0.0
        %646 = vmatpush1.msra.mxu0 %v340
        %647 = vmatprep.subr.mxu0 0.0
        %648 = vmatpush1.msra.mxu0 %v343
        %649 = vmatprep.subr.mxu0 0.0
        %650 = vmatpush1.msra.mxu0 %v346
        %651 = vmatprep.subr.mxu0 0.0
        %652 = vmatpush1.msra.mxu0 %v349
        %653 = vmatprep.subr.mxu0 0.0
        %654 = vmatpush1.msra.mxu0 %v352
        %655 = vmatprep.subr.mxu0 0.0
        %656 = vmatpush1.msra.mxu0 0.0
        %657 = vmatprep.subr.mxu0 0.0
        %658 = vmatpush1.msra.mxu0 0.0
        %659 = vmatprep.subr.mxu0 0.0
        %660 = vmatpush1.msra.mxu0 0.0
        %661 = vmatprep.subr.mxu0 0.0
        %662 = vmatpush1.msra.mxu0 0.0
        %663 = vmatprep.subr.mxu0 0.0
        %664 = vmatpush1.msra.mxu0 0.0
        %665 = vmatprep.subr.mxu0 0.0
        %666 = vmatpush1.msra.mxu0 0.0
        %667 = vmatprep.subr.mxu0 0.0
        %668 = vmatpush1.msra.mxu0 0.0
        %669 = vmatprep.subr.mxu0 0.0
        %670 = vmatpush1.msra.mxu0 0.0
        %671 = vmatprep.subr.mxu0 0.0
        %672 = vmatpush1.msra.mxu0 0.0
        %673 = vmatprep.subr.mxu0 0.0
        %674 = vmatpush1.msra.mxu0 0.0
        %675 = vmatprep.subr.mxu0 0.0
        %676 = vmatpush1.msra.mxu0 0.0
        %677 = vmatprep.subr.mxu0 0.0
        %678 = vmatpush1.msra.mxu0 0.0
        %679 = vmatprep.subr.mxu0 0.0
        %680 = vmatpush1.msra.mxu0 0.0
        %681 = vmatprep.subr.mxu0 0.0
        %682 = vmatpush1.msra.mxu0 0.0
        %683 = vmatprep.subr.mxu0 0.0
        %684 = vmatpush1.msra.mxu0 0.0
        %685 = vmatprep.subr.mxu0 0.0
        %686 = vmatpush1.msra.mxu0 0.0
        %687 = vmatprep.mubr.f32.mxu0 0.0
        %688 = vmatmul.mubr.f32.gmra.mrb[0].mxu0 %v545
        %v689 = vpop.f32.mrb[0].mxu0
        %v690 = vadd.f32 %v372, %v689
        %v691 = vpop.f32.mrb[0].mxu0
        %692 = vdwg.mxu0
        %v693 = vadd.f32 %v549, %v619
        %v694 = vxor.u32 %v693, 2147483648
        %v695 = vmul.f32 %v694, 1.442695
        %v696 = vpow.pop %v695
        %v697 = vadd.f32 %v696, 1.0
        %v698 = vrcp.pop %v697
        %v699 = vmul.f32 1.0, %v698
        %v700 = vadd.f32 %v550, %v621
        %v701 = vxor.u32 %v700, 2147483648
        %v702 = vmul.f32 %v701, 1.442695
        %v703 = vpow.pop %v702
        %v704 = vadd.f32 %v703, 1.0
        %v705 = vrcp.pop %v704
        %v706 = vmul.f32 1.0, %v705
        %v707 = vmul.f32 %v699, %v690
        %v708 = vadd.f32 %v551, %v707
        %v709 = vtanh.pop %v708
        %v710 = vsub.f32 1.0, %v706
        %v711 = vmul.f32 %v710, %v709
        %v712 = vmul.f32 %v706, %v545
        %v713 = vadd.f32 %v711, %v712
        %s714 = sadd.s32 %s355, 1
        %v715 = vstv %s714
        %vm716 = vcmp.lt.s32.totalorder %v715, %v354
        %v717 = vsel %vm716, 1, 0
        %718 = vset.pattern.permute.xlu0 0
        %719 = vperm.xlu0 %718, %v717
        %v720 = vpop.permute.xlu0 %719
        %vm721 = vcmp.eq.s32.totalorder %v720, 1
        %v722 = vsel %vm721, %v713, %v545
        %v723 = vsel %vm721, %v713, 0.0
        %s724 = scalar_lea.vmem %s291, 8 [#allocation8]
        %725 = vst [vmem:[%s724] sm:$0xff] %v723
        %s726 = scalar_lea.vmem %s259, 48 [#allocation3]
        %v727 = vld [vmem:[%s726] sm:$0xff]
        %v728 = vld [vmem:[%s726 + $0x8] sm:$0xff]
        %v729 = vld [vmem:[%s726 + $0x10] sm:$0xff]
        %730 = vmatprep.subr.mxu0 %v306
        %731 = vmatpush1.msra.mxu0 %v305
        %732 = vmatprep.subr.mxu0 %v309
        %733 = vmatpush1.msra.mxu0 %v308
        %734 = vmatprep.subr.mxu0 %v312
        %735 = vmatpush1.msra.mxu0 %v311
        %736 = vmatprep.subr.mxu0 %v315
        %737 = vmatpush1.msra.mxu0 %v314
        %738 = vmatprep.subr.mxu0 %v318
        %739 = vmatpush1.msra.mxu0 %v317
        %740 = vmatprep.subr.mxu0 %v321
        %741 = vmatpush1.msra.mxu0 %v320
        %742 = vmatprep.subr.mxu0 %v324
        %743 = vmatpush1.msra.mxu0 %v323
        %744 = vmatprep.subr.mxu0 %v327
        %745 = vmatpush1.msra.mxu0 %v326
        %746 = vmatprep.subr.mxu0 %v330
        %747 = vmatpush1.msra.mxu0 %v329
        %748 = vmatprep.subr.mxu0 %v333
        %749 = vmatpush1.msra.mxu0 %v332
        %750 = vmatprep.subr.mxu0 %v336
        %751 = vmatpush1.msra.mxu0 %v335
        %752 = vmatprep.subr.mxu0 %v339
        %753 = vmatpush1.msra.mxu0 %v338
        %754 = vmatprep.subr.mxu0 %v342
        %755 = vmatpush1.msra.mxu0 %v341
        %756 = vmatprep.subr.mxu0 %v345
        %757 = vmatpush1.msra.mxu0 %v344
        %758 = vmatprep.subr.mxu0 %v348
        %759 = vmatpush1.msra.mxu0 %v347
        %760 = vmatprep.subr.mxu0 %v351
        %761 = vmatpush1.msra.mxu0 %v350
        %762 = vmatprep.subr.mxu0 0.0
        %763 = vmatpush1.msra.mxu0 0.0
        %764 = vmatprep.subr.mxu0 0.0
        %765 = vmatpush1.msra.mxu0 0.0
        %766 = vmatprep.subr.mxu0 0.0
        %767 = vmatpush1.msra.mxu0 0.0
        %768 = vmatprep.subr.mxu0 0.0
        %769 = vmatpush1.msra.mxu0 0.0
        %770 = vmatprep.subr.mxu0 0.0
        %771 = vmatpush1.msra.mxu0 0.0
        %772 = vmatprep.subr.mxu0 0.0
        %773 = vmatpush1.msra.mxu0 0.0
        %774 = vmatprep.subr.mxu0 0.0
        %775 = vmatpush1.msra.mxu0 0.0
        %776 = vmatprep.subr.mxu0 0.0
        %777 = vmatpush1.msra.mxu0 0.0
        %778 = vmatprep.subr.mxu0 0.0
        %779 = vmatpush1.msra.mxu0 0.0
        %780 = vmatprep.subr.mxu0 0.0
        %781 = vmatpush1.msra.mxu0 0.0
        %782 = vmatprep.subr.mxu0 0.0
        %783 = vmatpush1.msra.mxu0 0.0
        %784 = vmatprep.subr.mxu0 0.0
        %785 = vmatpush1.msra.mxu0 0.0
        %786 = vmatprep.subr.mxu0 0.0
        %787 = vmatpush1.msra.mxu0 0.0
        %788 = vmatprep.subr.mxu0 0.0
        %789 = vmatpush1.msra.mxu0 0.0
        %790 = vmatprep.subr.mxu0 0.0
        %791 = vmatpush1.msra.mxu0 0.0
        %792 = vmatprep.subr.mxu0 0.0
        %793 = vmatpush1.msra.mxu0 0.0
        %794 = vmatprep.mubr.f32.mxu0 0.0
        %795 = vmatmul.mubr.f32.gmra.mrb[0].mxu0 %v722
        %v796 = vpop.f32.mrb[0].mxu0
        %v797 = vadd.f32 %v364, %v796
        %v798 = vpop.f32.mrb[0].mxu0
        %v799 = vadd.f32 %v368, %v798
        %800 = vdwg.mxu0
        %801 = vmatprep.subr.mxu0 0.0
        %802 = vmatpush1.msra.mxu0 %v307
        %803 = vmatprep.subr.mxu0 0.0
        %804 = vmatpush1.msra.mxu0 %v310
        %805 = vmatprep.subr.mxu0 0.0
        %806 = vmatpush1.msra.mxu0 %v313
        %807 = vmatprep.subr.mxu0 0.0
        %808 = vmatpush1.msra.mxu0 %v316
        %809 = vmatprep.subr.mxu0 0.0
        %810 = vmatpush1.msra.mxu0 %v319
        %811 = vmatprep.subr.mxu0 0.0
        %812 = vmatpush1.msra.mxu0 %v322
        %813 = vmatprep.subr.mxu0 0.0
        %814 = vmatpush1.msra.mxu0 %v325
        %815 = vmatprep.subr.mxu0 0.0
        %816 = vmatpush1.msra.mxu0 %v328
        %817 = vmatprep.subr.mxu0 0.0
        %818 = vmatpush1.msra.mxu0 %v331
        %819 = vmatprep.subr.mxu0 0.0
        %820 = vmatpush1.msra.mxu0 %v334
        %821 = vmatprep.subr.mxu0 0.0
        %822 = vmatpush1.msra.mxu0 %v337
        %823 = vmatprep.subr.mxu0 0.0
        %824 = vmatpush1.msra.mxu0 %v340
        %825 = vmatprep.subr.mxu0 0.0
        %826 = vmatpush1.msra.mxu0 %v343
        %827 = vmatprep.subr.mxu0 0.0
        %828 = vmatpush1.msra.mxu0 %v346
        %829 = vmatprep.subr.mxu0 0.0
        %830 = vmatpush1.msra.mxu0 %v349
        %831 = vmatprep.subr.mxu0 0.0
        %832 = vmatpush1.msra.mxu0 %v352
        %833 = vmatprep.subr.mxu0 0.0
        %834 = vmatpush1.msra.mxu0 0.0
        %835 = vmatprep.subr.mxu0 0.0
        %836 = vmatpush1.msra.mxu0 0.0
        %837 = vmatprep.subr.mxu0 0.0
        %838 = vmatpush1.msra.mxu0 0.0
        %839 = vmatprep.subr.mxu0 0.0
        %840 = vmatpush1.msra.mxu0 0.0
        %841 = vmatprep.subr.mxu0 0.0
        %842 = vmatpush1.msra.mxu0 0.0
        %843 = vmatprep.subr.mxu0 0.0
        %844 = vmatpush1.msra.mxu0 0.0
        %845 = vmatprep.subr.mxu0 0.0
        %846 = vmatpush1.msra.mxu0 0.0
        %847 = vmatprep.subr.mxu0 0.0
        %848 = vmatpush1.msra.mxu0 0.0
        %849 = vmatprep.subr.mxu0 0.0
        %850 = vmatpush1.msra.mxu0 0.0
        %851 = vmatprep.subr.mxu0 0.0
        %852 = vmatpush1.msra.mxu0 0.0
        %853 = vmatprep.subr.mxu0 0.0
        %854 = vmatpush1.msra.mxu0 0.0
        %855 = vmatprep.subr.mxu0 0.0
        %856 = vmatpush1.msra.mxu0 0.0
        %857 = vmatprep.subr.mxu0 0.0
        %858 = vmatpush1.msra.mxu0 0.0
        %859 = vmatprep.subr.mxu0 0.0
        %860 = vmatpush1.msra.mxu0 0.0
        %861 = vmatprep.subr.mxu0 0.0
        %862 = vmatpush1.msra.mxu0 0.0
        %863 = vmatprep.subr.mxu0 0.0
        %864 = vmatpush1.msra.mxu0 0.0
        %865 = vmatprep.mubr.f32.mxu0 0.0
        %866 = vmatmul.mubr.f32.gmra.mrb[0].mxu0 %v722
        %v867 = vpop.f32.mrb[0].mxu0
        %v868 = vadd.f32 %v372, %v867
        %v869 = vpop.f32.mrb[0].mxu0
        %870 = vdwg.mxu0
        %v871 = vadd.f32 %v727, %v797
        %v872 = vxor.u32 %v871, 2147483648
        %v873 = vmul.f32 %v872, 1.442695
        %v874 = vpow.pop %v873
        %v875 = vadd.f32 %v874, 1.0
        %v876 = vrcp.pop %v875
        %v877 = vmul.f32 1.0, %v876
        %v878 = vadd.f32 %v728, %v799
        %v879 = vxor.u32 %v878, 2147483648
        %v880 = vmul.f32 %v879, 1.442695
        %v881 = vpow.pop %v880
        %v882 = vadd.f32 %v881, 1.0
        %v883 = vrcp.pop %v882
        %v884 = vmul.f32 1.0, %v883
        %v885 = vmul.f32 %v877, %v868
        %v886 = vadd.f32 %v729, %v885
        %v887 = vtanh.pop %v886
        %v888 = vsub.f32 1.0, %v884
        %v889 = vmul.f32 %v888, %v887
        %v890 = vmul.f32 %v884, %v722
        %v891 = vadd.f32 %v889, %v890
        %s892 = sadd.s32 %s355, 2
        %v893 = vstv %s892
        %vm894 = vcmp.lt.s32.totalorder %v893, %v354
        %v895 = vsel %vm894, 1, 0
        %896 = vset.pattern.permute.xlu0 0
        %897 = vperm.xlu0 %896, %v895
        %v898 = vpop.permute.xlu0 %897
        %vm899 = vcmp.eq.s32.totalorder %v898, 1
        %v900 = vsel %vm899, %v891, %v722
        %v901 = vsel %vm899, %v891, 0.0
        %s902 = scalar_lea.vmem %s291, 16 [#allocation8]
        %903 = vst [vmem:[%s902] sm:$0xff] %v901
        %s904 = scalar_lea.vmem %s259, 72 [#allocation3]
        %v905 = vld [vmem:[%s904] sm:$0xff]
        %v906 = vld [vmem:[%s904 + $0x8] sm:$0xff]
        %v907 = vld [vmem:[%s904 + $0x10] sm:$0xff]
        %908 = vmatprep.subr.mxu0 %v306
        %909 = vmatpush1.msra.mxu0 %v305
        %910 = vmatprep.subr.mxu0 %v309
        %911 = vmatpush1.msra.mxu0 %v308
        %912 = vmatprep.subr.mxu0 %v312
        %913 = vmatpush1.msra.mxu0 %v311
        %914 = vmatprep.subr.mxu0 %v315
        %915 = vmatpush1.msra.mxu0 %v314
        %916 = vmatprep.subr.mxu0 %v318
        %917 = vmatpush1.msra.mxu0 %v317
        %918 = vmatprep.subr.mxu0 %v321
        %919 = vmatpush1.msra.mxu0 %v320
        %920 = vmatprep.subr.mxu0 %v324
        %921 = vmatpush1.msra.mxu0 %v323
        %922 = vmatprep.subr.mxu0 %v327
        %923 = vmatpush1.msra.mxu0 %v326
        %924 = vmatprep.subr.mxu0 %v330
        %925 = vmatpush1.msra.mxu0 %v329
        %926 = vmatprep.subr.mxu0 %v333
        %927 = vmatpush1.msra.mxu0 %v332
        %928 = vmatprep.subr.mxu0 %v336
        %929 = vmatpush1.msra.mxu0 %v335
        %930 = vmatprep.subr.mxu0 %v339
        %931 = vmatpush1.msra.mxu0 %v338
        %932 = vmatprep.subr.mxu0 %v342
        %933 = vmatpush1.msra.mxu0 %v341
        %934 = vmatprep.subr.mxu0 %v345
        %935 = vmatpush1.msra.mxu0 %v344
        %936 = vmatprep.subr.mxu0 %v348
        %937 = vmatpush1.msra.mxu0 %v347
        %938 = vmatprep.subr.mxu0 %v351
        %939 = vmatpush1.msra.mxu0 %v350
        %940 = vmatprep.subr.mxu0 0.0
        %941 = vmatpush1.msra.mxu0 0.0
        %942 = vmatprep.subr.mxu0 0.0
        %943 = vmatpush1.msra.mxu0 0.0
        %944 = vmatprep.subr.mxu0 0.0
        %945 = vmatpush1.msra.mxu0 0.0
        %946 = vmatprep.subr.mxu0 0.0
        %947 = vmatpush1.msra.mxu0 0.0
        %948 = vmatprep.subr.mxu0 0.0
        %949 = vmatpush1.msra.mxu0 0.0
        %950 = vmatprep.subr.mxu0 0.0
        %951 = vmatpush1.msra.mxu0 0.0
        %952 = vmatprep.subr.mxu0 0.0
        %953 = vmatpush1.msra.mxu0 0.0
        %954 = vmatprep.subr.mxu0 0.0
        %955 = vmatpush1.msra.mxu0 0.0
        %956 = vmatprep.subr.mxu0 0.0
        %957 = vmatpush1.msra.mxu0 0.0
        %958 = vmatprep.subr.mxu0 0.0
        %959 = vmatpush1.msra.mxu0 0.0
        %960 = vmatprep.subr.mxu0 0.0
        %961 = vmatpush1.msra.mxu0 0.0
        %962 = vmatprep.subr.mxu0 0.0
        %963 = vmatpush1.msra.mxu0 0.0
        %964 = vmatprep.subr.mxu0 0.0
        %965 = vmatpush1.msra.mxu0 0.0
        %966 = vmatprep.subr.mxu0 0.0
        %967 = vmatpush1.msra.mxu0 0.0
        %968 = vmatprep.subr.mxu0 0.0
        %969 = vmatpush1.msra.mxu0 0.0
        %970 = vmatprep.subr.mxu0 0.0
        %971 = vmatpush1.msra.mxu0 0.0
        %972 = vmatprep.mubr.f32.mxu0 0.0
        %973 = vmatmul.mubr.f32.gmra.mrb[0].mxu0 %v900
        %v974 = vpop.f32.mrb[0].mxu0
        %v975 = vadd.f32 %v364, %v974
        %v976 = vpop.f32.mrb[0].mxu0
        %v977 = vadd.f32 %v368, %v976
        %978 = vdwg.mxu0
        %979 = vmatprep.subr.mxu0 0.0
        %980 = vmatpush1.msra.mxu0 %v307
        %981 = vmatprep.subr.mxu0 0.0
        %982 = vmatpush1.msra.mxu0 %v310
        %983 = vmatprep.subr.mxu0 0.0
        %984 = vmatpush1.msra.mxu0 %v313
        %985 = vmatprep.subr.mxu0 0.0
        %986 = vmatpush1.msra.mxu0 %v316
        %987 = vmatprep.subr.mxu0 0.0
        %988 = vmatpush1.msra.mxu0 %v319
        %989 = vmatprep.subr.mxu0 0.0
        %990 = vmatpush1.msra.mxu0 %v322
        %991 = vmatprep.subr.mxu0 0.0
        %992 = vmatpush1.msra.mxu0 %v325
        %993 = vmatprep.subr.mxu0 0.0
        %994 = vmatpush1.msra.mxu0 %v328
        %995 = vmatprep.subr.mxu0 0.0
        %996 = vmatpush1.msra.mxu0 %v331
        %997 = vmatprep.subr.mxu0 0.0
        %998 = vmatpush1.msra.mxu0 %v334
        %999 = vmatprep.subr.mxu0 0.0
        %1000 = vmatpush1.msra.mxu0 %v337
        %1001 = vmatprep.subr.mxu0 0.0
        %1002 = vmatpush1.msra.mxu0 %v340
        %1003 = vmatprep.subr.mxu0 0.0
        %1004 = vmatpush1.msra.mxu0 %v343
        %1005 = vmatprep.subr.mxu0 0.0
        %1006 = vmatpush1.msra.mxu0 %v346
        %1007 = vmatprep.subr.mxu0 0.0
        %1008 = vmatpush1.msra.mxu0 %v349
        %1009 = vmatprep.subr.mxu0 0.0
        %1010 = vmatpush1.msra.mxu0 %v352
        %1011 = vmatprep.subr.mxu0 0.0
        %1012 = vmatpush1.msra.mxu0 0.0
        %1013 = vmatprep.subr.mxu0 0.0
        %1014 = vmatpush1.msra.mxu0 0.0
        %1015 = vmatprep.subr.mxu0 0.0
        %1016 = vmatpush1.msra.mxu0 0.0
        %1017 = vmatprep.subr.mxu0 0.0
        %1018 = vmatpush1.msra.mxu0 0.0
        %1019 = vmatprep.subr.mxu0 0.0
        %1020 = vmatpush1.msra.mxu0 0.0
        %1021 = vmatprep.subr.mxu0 0.0
        %1022 = vmatpush1.msra.mxu0 0.0
        %1023 = vmatprep.subr.mxu0 0.0
        %1024 = vmatpush1.msra.mxu0 0.0
        %1025 = vmatprep.subr.mxu0 0.0
        %1026 = vmatpush1.msra.mxu0 0.0
        %1027 = vmatprep.subr.mxu0 0.0
        %1028 = vmatpush1.msra.mxu0 0.0
        %1029 = vmatprep.subr.mxu0 0.0
        %1030 = vmatpush1.msra.mxu0 0.0
        %1031 = vmatprep.subr.mxu0 0.0
        %1032 = vmatpush1.msra.mxu0 0.0
        %1033 = vmatprep.subr.mxu0 0.0
        %1034 = vmatpush1.msra.mxu0 0.0
        %1035 = vmatprep.subr.mxu0 0.0
        %1036 = vmatpush1.msra.mxu0 0.0
        %1037 = vmatprep.subr.mxu0 0.0
        %1038 = vmatpush1.msra.mxu0 0.0
        %1039 = vmatprep.subr.mxu0 0.0
        %1040 = vmatpush1.msra.mxu0 0.0
        %1041 = vmatprep.subr.mxu0 0.0
        %1042 = vmatpush1.msra.mxu0 0.0
        %1043 = vmatprep.mubr.f32.mxu0 0.0
        %1044 = vmatmul.mubr.f32.gmra.mrb[0].mxu0 %v900
        %v1045 = vpop.f32.mrb[0].mxu0
        %v1046 = vadd.f32 %v372, %v1045
        %v1047 = vpop.f32.mrb[0].mxu0
        %1048 = vdwg.mxu0
        %v1049 = vadd.f32 %v905, %v975
        %v1050 = vxor.u32 %v1049, 2147483648
        %v1051 = vmul.f32 %v1050, 1.442695
        %v1052 = vpow.pop %v1051
        %v1053 = vadd.f32 %v1052, 1.0
        %v1054 = vrcp.pop %v1053
        %v1055 = vmul.f32 1.0, %v1054
        %v1056 = vadd.f32 %v906, %v977
        %v1057 = vxor.u32 %v1056, 2147483648
        %v1058 = vmul.f32 %v1057, 1.442695
        %v1059 = vpow.pop %v1058
        %v1060 = vadd.f32 %v1059, 1.0
        %v1061 = vrcp.pop %v1060
        %v1062 = vmul.f32 1.0, %v1061
        %v1063 = vmul.f32 %v1055, %v1046
        %v1064 = vadd.f32 %v907, %v1063
        %v1065 = vtanh.pop %v1064
        %v1066 = vsub.f32 1.0, %v1062
        %v1067 = vmul.f32 %v1066, %v1065
        %v1068 = vmul.f32 %v1062, %v900
        %v1069 = vadd.f32 %v1067, %v1068
        %s1070 = sadd.s32 %s355, 3
        %v1071 = vstv %s1070
        %vm1072 = vcmp.lt.s32.totalorder %v1071, %v354
        %v1073 = vsel %vm1072, 1, 0
        %1074 = vset.pattern.permute.xlu0 0
        %1075 = vperm.xlu0 %1074, %v1073
        %v1076 = vpop.permute.xlu0 %1075
        %vm1077 = vcmp.eq.s32.totalorder %v1076, 1
        %v1078 = vsel %vm1077, %v1069, %v900
        %v1079 = vsel %vm1077, %v1069, 0.0
        %s1080 = scalar_lea.vmem %s291, 24 [#allocation8]
        %1081 = vst [vmem:[%s1080] sm:$0xff] %v1079
        %1082 = vst [vmem:[#allocation2] sm:$0xff] %v1078
        %p1083 = scmp.eq.s32.totalorder %s30, 1
        // Predicated region
        $region49: #{_gru_pallas.1} parent=35 // pred_check
          %p1084 = pneg %p1083
        $region50: #{_gru_pallas.1} parent=35 // pred_check_branch
          %1086 = sbr.rel (%p1084) target = $region52
        $region51: #{_gru_pallas.1} parent=35 // pred_region
          %1087 = vst [vmem:[#allocation9] sm:$0xff] %v1078
        $region52: #{_gru_pallas.1} parent=35 // pred_fallthru
          _
        %s1088 = sand.u32 %s143, 1
        %s1089 = scalar_lea.sflag [#allocation5], %s1088
        %s1090 = sand.u32 %s143, 1
        %s1091 = smul.addr %s1090, 32
        %s1092 = scalar_lea.vmem [#allocation8], %s1091
        // Predicated region
        $region53: #{_gru_pallas.1} parent=35 // pred_check
          %p1093 = pneg %p153
        $region54: #{_gru_pallas.1} parent=35 // pred_check_branch
          %1095 = sbr.rel (%p1093) target = $region56
        $region55: #{_gru_pallas.1} parent=35 // pred_region
          %s1096 = smul.u32 4, %s30
          %s1098 = ssub.s32 512, 512
          %1099 = vsyncadd %s1089, %s1098
          %s1100 = sadd.s32 %s29, %s1096
          %s1101 = smul.addr %s1100, 128
          %s1102 = scalar_lea.hbm %s4, %s1101
          %s1103 = sshll.u32 %s1092, 4
          %s1104 = int_to_ptr.vmem [resolvable:$true] %s1103
          %1109 = dma.vmem_to_hbm [thread:$0]  %s1104, 512, %s1102, %s1089, 128, 128, 8
        $region56: #{_gru_pallas.1} parent=35 // pred_fallthru
          _
        // Predicated region
        $region57: #{_gru_pallas.1} parent=35 // pred_check
          %p1110 = pneg %p179
        $region58: #{_gru_pallas.1} parent=35 // pred_check_branch
          %1112 = sbr.rel (%p1110) target = $region60
        $region59: #{_gru_pallas.1} parent=35 // pred_region
          %s1114 = ssub.s32 128, 128
          %1115 = vsyncadd [#allocation10], %s1114
          %s1116 = smul.addr %s29, 128
          %s1117 = scalar_lea.hbm %s5, %s1116
          %s1119 = sshll.u32 [#allocation9], 4
          %s1120 = int_to_ptr.vmem [resolvable:$true] %s1119
          %1122 = dma.vmem_to_hbm [thread:$0]  %s1120, 128, %s1117, [#allocation10]
        $region60: #{_gru_pallas.1} parent=35 // pred_fallthru
          _
        // Predicated region
        $region61: #{_gru_pallas.1} parent=35 // pred_check
          %p1123 = pneg %p179
        $region62: #{_gru_pallas.1} parent=35 // pred_check_branch
          %1125 = sbr.rel (%p1123) target = $region64
        $region63: #{_gru_pallas.1} parent=35 // pred_region
          %1126 = dma.done [#allocation10], 128
        $region64: #{_gru_pallas.1} parent=35 // pred_fallthru
          _
      $region36: #{_gru_pallas.1} parent=5 // pred_fallthru
        _
      %p1127 = scmp.le.s32.totalorder 2, %s20
      // Predicated region
      $region65: #{_gru_pallas.1} parent=5 // pred_check
        %p1128 = pneg %p1127
      $region66: #{_gru_pallas.1} parent=5 // pred_check_branch
        %1130 = sbr.rel (%p1128) target = $region68
      $region67: #{_gru_pallas.1} parent=5 // pred_region
        %s1131 = ssub.s32 %s20, 2
        // Predicated region
        $region69: #{_gru_pallas.1} parent=67 // pred_check
          %p1132 = pneg %p159
        $region70: #{_gru_pallas.1} parent=67 // pred_check_branch
          %1134 = sbr.rel (%p1132) target = $region72
        $region71: #{_gru_pallas.1} parent=67 // pred_region
          %s1135 = sand.u32 %s144, 1
          %s1136 = scalar_lea.sflag [#allocation5], %s1135
          %s1137 = sand.u32 %s144, 1
          %s1138 = smul.addr %s1137, 32
          %s1139 = scalar_lea.vmem [#allocation8], %s1138
          %1140 = dma.done %s1136, 512
        $region72: #{_gru_pallas.1} parent=67 // pred_fallthru
          _
      $region68: #{_gru_pallas.1} parent=5 // pred_fallthru
        _
    $region6: #{_gru_pallas.1} parent=1 // loop_footer
      %s24 = sadd.s32 1, %s20
    $region7: #{_gru_pallas.1} parent=1 // loop_footer_branch
      %19 = sbr.rel target = $region3
    $region8: #{_gru_pallas.1} parent=1 // loop_exit
      _
    %1141 = vsyncpa [#allocation4], 1
    %s1142 = scalar_lea.sflag [#allocation4], 1
    %1143 = vsyncpa %s1142, 1
    %1144 = vsyncpa [#allocation7], 1
    %1145 = vsyncpa [#allocation5], 1
    %s1146 = scalar_lea.sflag [#allocation5], 1
    %1147 = vsyncpa %s1146, 1
    %1148 = vsyncpa [#allocation10], 1

</llo_original>
